<compile_context>
chip_gen: v6e
topology: v6e:2x2x1
jax: 0.10.0
libtpu: 0.0.40
codegen_flags: <defaults>
</compile_context>

<pallas_src>
import jax
import jax.numpy as jnp
from jax.experimental import pallas as pl
from jax.experimental.pallas import tpu as pltpu


# ---------------------------------------------------------------------------
# Fused kernel: one grid step == B_blk bags.
#   GAP + Linear + ReLU extractor -> attention-MIL aggregation -> mean over
#   bag -> project -> tanh -> fc
# ---------------------------------------------------------------------------
def fused_forward_kernel(x_ref, w1_ref, b1_ref, v_ref, u_ref, wp_ref, bp_ref,
                         wf_ref, bf_ref, out_ref, attn_ref):
    b_blk, bag, c, hw = x_ref.shape
    rows = b_blk * bag
    d = w1_ref.shape[1]
    a = v_ref.shape[1]
    inv_hw = 1.0 / hw
    inv_bag = 1.0 / bag

    # ---- resnet.forward_extract: global-average-pool + Linear + ReLU -------
    # Pool over H*W in-kernel (XLU lane reduce), so the MXU contraction is K=C.
    x3 = x_ref[...].reshape(rows, c, hw)                  # leading-dim merge (free)
    pooled = jnp.sum(x3, axis=-1) * inv_hw                # (rows, C)
    feats = jnp.dot(pooled, w1_ref[...],
                    preferred_element_type=jnp.float32) + b1_ref[...]
    feats = jnp.maximum(feats, 0.0)                       # (rows, D)

    # ---- attention-MIL scores + per-bag softmax (bag on the lane axis) -----
    h = jnp.tanh(jnp.dot(feats, v_ref[...],
                         preferred_element_type=jnp.float32))      # (rows, A)
    h3 = h.reshape(b_blk, bag, a)                         # leading-dim split (free)
    scores = jnp.sum(h3 * u_ref[...], axis=-1)            # (B_blk, bag)
    m = jnp.max(scores, axis=-1, keepdims=True)
    e = jnp.exp(scores - m)
    denom = jnp.sum(e, axis=-1, keepdims=True)
    attn = e * pl.reciprocal(denom, approx=True)          # (B_blk, bag) lane-dense
    attn_ref[...] = attn[None]                            # one (1,B_blk,bag) store

    # aggregator returns attention-weighted per-instance features; the module
    # then takes features.mean(dim=1):  agg[b] = (1/bag) * sum_n attn[b,n]*feats[b,n].
    feats3 = feats.reshape(b_blk, bag, d)                 # leading-dim split (free)
    w_attn = (attn * inv_bag)[:, None, :]                 # (B_blk, 1, bag)
    agg = jnp.einsum("bqn,bnd->bqd", w_attn, feats3,
                     preferred_element_type=jnp.float32).reshape(b_blk, d)

    # ---- project -> tanh -> dropout(identity in eval) -> fc ----------------
    proj = jnp.tanh(jnp.dot(agg, wp_ref[...],
                            preferred_element_type=jnp.float32) + bp_ref[...])
    # TODO(synk): nn.Dropout(p=0.3) is identity in eval mode; training parity
    # would need a pltpu.prng_* stochastic mask.
    logits = jnp.dot(proj, wf_ref[...],
                     preferred_element_type=jnp.float32) + bf_ref[...]
    out_ref[...] = logits[None]                           # one (1,B_blk,F) store


def _pick_block_batch(batch, bag, c, hw, *, max_rows=512,
                      vmem_budget_bytes=40 * 1024 * 1024):
    """Largest divisor of `batch` whose double-buffered f32 x tile fits the VMEM
    budget, keeps MXU rows bounded, and leaves >= 2 grid steps so the batch axis
    can shard across v7x's 2 TensorCores. (On large real workloads prefer
    B_blk*bag as a multiple of 256 for v6e/v7x, 128 for v5e.)"""
    best = 1
    for cand in range(1, batch + 1):
        if batch % cand:
            continue
        if batch >= 2 and batch // cand < 2:
            continue                                       # keep >=2 steps (v7x)
        rows = cand * bag
        tile_bytes = 2 * rows * c * hw * 4                 # double-buffered f32 tile
        if rows <= max_rows and tile_bytes <= vmem_budget_bytes:
            best = cand
    return best


def aggregation_project_forward(x, params):
    """x: (batch, bag, C, H, W) float32. Returns (logits, attention_weights)."""
    batch, bag, c, h, w = x.shape
    hw = h * w
    out_features = params["wf"].shape[1]

    b_blk = _pick_block_batch(batch, bag, c, hw)
    n_blk = batch // b_blk

    # Free contiguous reshape; x stays f32 so it is read from HBM exactly once.
    x4 = x.reshape(batch, bag, c, hw)

    const = lambda i: (0, 0)   # weights: DMA'd once, VMEM-resident across steps

    out3, attn3 = pl.pallas_call(
        fused_forward_kernel,
        out_shape=(
            jax.ShapeDtypeStruct((n_blk, b_blk, out_features), jnp.float32),
            jax.ShapeDtypeStruct((n_blk, b_blk, bag), jnp.float32),
        ),
        grid_spec=pltpu.PrefetchScalarGridSpec(
            num_scalar_prefetch=0,
            grid=(n_blk,),
            in_specs=[
                pl.BlockSpec((b_blk, bag, c, hw), lambda i: (i, 0, 0, 0)),  # x tile
                pl.BlockSpec(params["w1"].shape, const),   # extractor weight (C, D)
                pl.BlockSpec(params["b1"].shape, const),   # extractor bias
                pl.BlockSpec(params["v"].shape, const),    # attention V
                pl.BlockSpec(params["u"].shape, const),    # attention u
                pl.BlockSpec(params["wp"].shape, const),   # project weight
                pl.BlockSpec(params["bp"].shape, const),   # project bias
                pl.BlockSpec(params["wf"].shape, const),   # fc weight
                pl.BlockSpec(params["bf"].shape, const),   # fc bias
            ],
            out_specs=(
                pl.BlockSpec((1, b_blk, out_features), lambda i: (i, 0, 0)),
                pl.BlockSpec((1, b_blk, bag), lambda i: (i, 0, 0)),
            ),
        ),
        compiler_params=pltpu.CompilerParams(
            dimension_semantics=("parallel",),     # shard grid steps across TCs
            vmem_limit_bytes=48 * 1024 * 1024,     # safe under v7x's 64 MiB phys
        ),
    )(x4, params["w1"], params["b1"], params["v"], params["u"],
      params["wp"], params["bp"], params["wf"], params["bf"])

    return out3.reshape(batch, out_features), attn3.reshape(batch, bag)


# ---------------------------------------------------------------------------
# Pure-JAX reference (f32) for a correctness check of the fused kernel.
# ---------------------------------------------------------------------------
def reference_forward(x, params):
    batch, bag, c, h, w = x.shape
    d = params["w1"].shape[1]
    pooled = x.reshape(batch * bag, c, h * w).mean(axis=-1)             # (N, C)
    feats = jnp.maximum(pooled @ params["w1"] + params["b1"], 0.0)      # (N, D)
    feats = feats.reshape(batch, bag, d)
    hmat = jnp.tanh(jnp.einsum("bnd,da->bna", feats, params["v"]))
    scores = jnp.sum(hmat * params["u"][None], axis=-1)                 # (B, bag)
    attn = jax.nn.softmax(scores, axis=1)
    agg = jnp.mean(attn[:, :, None] * feats, axis=1)                    # (B, D)
    proj = jnp.tanh(agg @ params["wp"] + params["bp"])
    out = proj @ params["wf"] + params["bf"]
    return out, attn


def init_params(key, c, resnet_dim, attn_dim, hdim, out_features):
    ks = jax.random.split(key, 8)
    s = 0.05
    return {
        # synthetic "resnet" extractor: GAP + Linear + ReLU
        "w1": s * jax.random.normal(ks[0], (c, resnet_dim), jnp.float32),
        "b1": s * jax.random.normal(ks[1], (1, resnet_dim), jnp.float32),
        # attention aggregator (aggregator_dim == resnet_dim)
        "v":  s * jax.random.normal(ks[2], (resnet_dim, attn_dim), jnp.float32),
        "u":  s * jax.random.normal(ks[3], (1, attn_dim), jnp.float32),
        # self.project = nn.Linear(aggregator_dim, hdim)
        "wp": s * jax.random.normal(ks[4], (resnet_dim, hdim), jnp.float32),
        "bp": s * jax.random.normal(ks[5], (1, hdim), jnp.float32),
        # self.fc = nn.Linear(hdim, out_features)
        "wf": s * jax.random.normal(ks[6], (hdim, out_features), jnp.float32),
        "bf": s * jax.random.normal(ks[7], (1, out_features), jnp.float32),
    }


if __name__ == "__main__":
    key = jax.random.PRNGKey(0)
    k_x, k_p = jax.random.split(key)

    batch, bag, c, h, w = 8, 4, 4, 16, 16
    resnet_dim, attn_dim, hdim, out_features = 128, 64, 64, 1

    x = jax.random.normal(k_x, (batch, bag, c, h, w), jnp.float32)
    params = init_params(k_p, c, resnet_dim, attn_dim, hdim, out_features)

    out, attn = jax.jit(aggregation_project_forward)(x, params)
    jax.block_until_ready((out, attn))

    ref_out, ref_attn = reference_forward(x, params)
    assert out.shape == (batch, out_features)
    assert attn.shape == (batch, bag)
    assert jnp.allclose(out, ref_out, atol=5e-3, rtol=5e-2)
    assert jnp.allclose(attn, ref_attn, atol=5e-3, rtol=5e-2)
    print("KERNEL_OK")
</pallas_src>

<mosaic_0001>
module attributes {stable_mosaic.version = 11 : i64} {
  func.func @fused_forward_kernel(%arg0: i32, %arg1: memref<4x4x4x256xf32, #tpu.memory_space<vmem>>, %arg2: memref<4x128xf32, #tpu.memory_space<vmem>>, %arg3: memref<1x128xf32, #tpu.memory_space<vmem>>, %arg4: memref<128x64xf32, #tpu.memory_space<vmem>>, %arg5: memref<1x64xf32, #tpu.memory_space<vmem>>, %arg6: memref<128x64xf32, #tpu.memory_space<vmem>>, %arg7: memref<1x64xf32, #tpu.memory_space<vmem>>, %arg8: memref<64x1xf32, #tpu.memory_space<vmem>>, %arg9: memref<1x1xf32, #tpu.memory_space<vmem>>, %arg10: memref<1x4x1xf32, #tpu.memory_space<vmem>>, %arg11: memref<1x4x4xf32, #tpu.memory_space<vmem>>) attributes {dimension_semantics = [#tpu.dimension_semantics<parallel>], iteration_bounds = array<i64: 2>, scalar_prefetch = 0 : i64, scratch_operands = 0 : i64, tpu.core_type = #tpu.core_type<tc>, window_params = [{transform_indices = @transform_0, window_bounds = array<i64: 4, 4, 4, 256>}, {pipeline_mode = #tpu.pipeline_mode<synchronous>, transform_indices = @transform_1, window_bounds = array<i64: 4, 128>}, {pipeline_mode = #tpu.pipeline_mode<synchronous>, transform_indices = @transform_2, window_bounds = array<i64: 1, 128>}, {pipeline_mode = #tpu.pipeline_mode<synchronous>, transform_indices = @transform_3, window_bounds = array<i64: 128, 64>}, {pipeline_mode = #tpu.pipeline_mode<synchronous>, transform_indices = @transform_4, window_bounds = array<i64: 1, 64>}, {pipeline_mode = #tpu.pipeline_mode<synchronous>, transform_indices = @transform_5, window_bounds = array<i64: 128, 64>}, {pipeline_mode = #tpu.pipeline_mode<synchronous>, transform_indices = @transform_6, window_bounds = array<i64: 1, 64>}, {pipeline_mode = #tpu.pipeline_mode<synchronous>, transform_indices = @transform_7, window_bounds = array<i64: 64, 1>}, {pipeline_mode = #tpu.pipeline_mode<synchronous>, transform_indices = @transform_8, window_bounds = array<i64: 1, 1>}, {transform_indices = @transform_9, window_bounds = array<i64: 1, 4, 1>}, {transform_indices = @transform_10, window_bounds = array<i64: 1, 4, 4>}]} {
    %c0 = arith.constant 0 : index
    %c0_0 = arith.constant 0 : index
    %c0_1 = arith.constant 0 : index
    %c0_2 = arith.constant 0 : index
    %0 = vector.load %arg1[%c0, %c0_0, %c0_1, %c0_2] : memref<4x4x4x256xf32, #tpu.memory_space<vmem>>, vector<4x4x4x256xf32>
    %1 = vector.shape_cast %0 : vector<4x4x4x256xf32> to vector<16x4x256xf32>
    %cst = arith.constant dense<0.000000e+00> : vector<16x4xf32>
    %2 = vector.multi_reduction <add>, %1, %cst [2] : vector<16x4x256xf32> to vector<16x4xf32>
    %cst_3 = arith.constant 3.906250e-03 : f32
    %3 = vector.broadcast %cst_3 : f32 to vector<16x4xf32>
    %4 = arith.mulf %2, %3 : vector<16x4xf32>
    %c0_4 = arith.constant 0 : index
    %c0_5 = arith.constant 0 : index
    %5 = vector.load %arg2[%c0_4, %c0_5] : memref<4x128xf32, #tpu.memory_space<vmem>>, vector<4x128xf32>
    %cst_6 = arith.constant dense<0.000000e+00> : vector<16x128xf32>
    %6 = tpu.matmul %4, %5, %cst_6 {dimension_numbers = #tpu.dot_dimension_numbers<[1], [0], [0], [1], [0, 0, 1, 1], [], []>} : vector<16x4xf32>, vector<4x128xf32>, vector<16x128xf32> -> vector<16x128xf32>
    %c0_7 = arith.constant 0 : index
    %c0_8 = arith.constant 0 : index
    %7 = vector.load %arg3[%c0_7, %c0_8] : memref<1x128xf32, #tpu.memory_space<vmem>>, vector<1x128xf32>
    %8 = vector.broadcast %7 : vector<1x128xf32> to vector<16x128xf32>
    %9 = arith.addf %6, %8 : vector<16x128xf32>
    %cst_9 = arith.constant 0.000000e+00 : f32
    %10 = vector.broadcast %cst_9 : f32 to vector<16x128xf32>
    %11 = arith.maximumf %9, %10 : vector<16x128xf32>
    %c0_10 = arith.constant 0 : index
    %c0_11 = arith.constant 0 : index
    %12 = vector.load %arg4[%c0_10, %c0_11] : memref<128x64xf32, #tpu.memory_space<vmem>>, vector<128x64xf32>
    %cst_12 = arith.constant dense<0.000000e+00> : vector<16x64xf32>
    %13 = tpu.matmul %11, %12, %cst_12 {dimension_numbers = #tpu.dot_dimension_numbers<[1], [0], [0], [1], [0, 0, 1, 1], [], []>} : vector<16x128xf32>, vector<128x64xf32>, vector<16x64xf32> -> vector<16x64xf32>
    %14 = math.tanh %13 : vector<16x64xf32>
    %15 = vector.shape_cast %14 : vector<16x64xf32> to vector<4x4x64xf32>
    %c0_13 = arith.constant 0 : index
    %c0_14 = arith.constant 0 : index
    %16 = vector.load %arg5[%c0_13, %c0_14] : memref<1x64xf32, #tpu.memory_space<vmem>>, vector<1x64xf32>
    %17 = vector.shape_cast %16 : vector<1x64xf32> to vector<1x1x64xf32>
    %18 = vector.broadcast %17 : vector<1x1x64xf32> to vector<4x4x64xf32>
    %19 = arith.mulf %15, %18 : vector<4x4x64xf32>
    %cst_15 = arith.constant dense<0.000000e+00> : vector<4x4xf32>
    %20 = vector.multi_reduction <add>, %19, %cst_15 [2] : vector<4x4x64xf32> to vector<4x4xf32>
    %cst_16 = arith.constant dense<0xFF800000> : vector<4xf32>
    %21 = vector.multi_reduction <maximumf>, %20, %cst_16 [1] : vector<4x4xf32> to vector<4xf32>
    %22 = vector.shape_cast %21 : vector<4xf32> to vector<4x1xf32>
    %23 = vector.broadcast %22 : vector<4x1xf32> to vector<4x4xf32>
    %24 = arith.subf %20, %23 : vector<4x4xf32>
    %25 = math.exp %24 : vector<4x4xf32>
    %cst_17 = arith.constant dense<0.000000e+00> : vector<4xf32>
    %26 = vector.multi_reduction <add>, %25, %cst_17 [1] : vector<4x4xf32> to vector<4xf32>
    %27 = vector.shape_cast %26 : vector<4xf32> to vector<4x1xf32>
    %28 = tpu.reciprocal %27 {approx = true} : vector<4x1xf32> -> vector<4x1xf32>
    %29 = vector.broadcast %28 : vector<4x1xf32> to vector<4x4xf32>
    %30 = arith.mulf %25, %29 : vector<4x4xf32>
    %31 = vector.shape_cast %30 : vector<4x4xf32> to vector<1x4x4xf32>
    %c0_18 = arith.constant 0 : index
    %c0_19 = arith.constant 0 : index
    %c0_20 = arith.constant 0 : index
    %32 = vector.load %arg11[%c0_18, %c0_19, %c0_20] : memref<1x4x4xf32, #tpu.memory_space<vmem>>, vector<1x4x4xf32>
    tpu.vector_store %arg11[%c0_18, %c0_19, %c0_20], %31 {strides = array<i32>} : memref<1x4x4xf32, #tpu.memory_space<vmem>>, vector<1x4x4xf32>,
    %33 = vector.shape_cast %11 : vector<16x128xf32> to vector<4x4x128xf32>
    %cst_21 = arith.constant 2.500000e-01 : f32
    %34 = vector.broadcast %cst_21 : f32 to vector<4x4xf32>
    %35 = arith.mulf %30, %34 : vector<4x4xf32>
    %36 = vector.shape_cast %35 : vector<4x4xf32> to vector<4x1x4xf32>
    "tpu.trace_start"() <{level = 10 : i32, message = "bqn,bnd->bqd"}> : () -> ()
    %cst_22 = arith.constant dense<0.000000e+00> : vector<4x1x128xf32>
    %37 = tpu.matmul %36, %33, %cst_22 {dimension_numbers = #tpu.dot_dimension_numbers<[2], [1], [1], [2], [0, 0, 0, 1, 1, 2], [0], [0]>} : vector<4x1x4xf32>, vector<4x4x128xf32>, vector<4x1x128xf32> -> vector<4x1x128xf32>
    "tpu.trace_stop"() : () -> ()
    %38 = vector.shape_cast %37 : vector<4x1x128xf32> to vector<4x128xf32>
    %c0_23 = arith.constant 0 : index
    %c0_24 = arith.constant 0 : index
    %39 = vector.load %arg6[%c0_23, %c0_24] : memref<128x64xf32, #tpu.memory_space<vmem>>, vector<128x64xf32>
    %cst_25 = arith.constant dense<0.000000e+00> : vector<4x64xf32>
    %40 = tpu.matmul %38, %39, %cst_25 {dimension_numbers = #tpu.dot_dimension_numbers<[1], [0], [0], [1], [0, 0, 1, 1], [], []>} : vector<4x128xf32>, vector<128x64xf32>, vector<4x64xf32> -> vector<4x64xf32>
    %c0_26 = arith.constant 0 : index
    %c0_27 = arith.constant 0 : index
    %41 = vector.load %arg7[%c0_26, %c0_27] : memref<1x64xf32, #tpu.memory_space<vmem>>, vector<1x64xf32>
    %42 = vector.broadcast %41 : vector<1x64xf32> to vector<4x64xf32>
    %43 = arith.addf %40, %42 : vector<4x64xf32>
    %44 = math.tanh %43 : vector<4x64xf32>
    %c0_28 = arith.constant 0 : index
    %c0_29 = arith.constant 0 : index
    %45 = vector.load %arg8[%c0_28, %c0_29] : memref<64x1xf32, #tpu.memory_space<vmem>>, vector<64x1xf32>
    %cst_30 = arith.constant dense<0.000000e+00> : vector<4x1xf32>
    %46 = tpu.matmul %44, %45, %cst_30 {dimension_numbers = #tpu.dot_dimension_numbers<[1], [0], [0], [1], [0, 0, 1, 1], [], []>} : vector<4x64xf32>, vector<64x1xf32>, vector<4x1xf32> -> vector<4x1xf32>
    %c0_31 = arith.constant 0 : index
    %c0_32 = arith.constant 0 : index
    %47 = vector.load %arg9[%c0_31, %c0_32] : memref<1x1xf32, #tpu.memory_space<vmem>>, vector<1x1xf32>
    %48 = vector.broadcast %47 : vector<1x1xf32> to vector<4x1xf32>
    %49 = arith.addf %46, %48 : vector<4x1xf32>
    %50 = vector.shape_cast %49 : vector<4x1xf32> to vector<1x4x1xf32>
    %c0_33 = arith.constant 0 : index
    %c0_34 = arith.constant 0 : index
    %c0_35 = arith.constant 0 : index
    %51 = vector.load %arg10[%c0_33, %c0_34, %c0_35] : memref<1x4x1xf32, #tpu.memory_space<vmem>>, vector<1x4x1xf32>
    tpu.vector_store %arg10[%c0_33, %c0_34, %c0_35], %50 {strides = array<i32>} : memref<1x4x1xf32, #tpu.memory_space<vmem>>, vector<1x4x1xf32>,
    return
  }
  func.func @transform_0(%arg0: i32) -> (i32, i32, i32, i32) {
    %c0_i32 = arith.constant 0 : i32
    %c0_i32_0 = arith.constant 0 : i32
    %c0_i32_1 = arith.constant 0 : i32
    %c0_i32_2 = arith.constant 0 : i32
    return %arg0, %c0_i32, %c0_i32_0, %c0_i32_1 : i32, i32, i32, i32
  }
  func.func @transform_1(%arg0: i32) -> (i32, i32) {
    %c0_i32 = arith.constant 0 : i32
    %c0_i32_0 = arith.constant 0 : i32
    %c0_i32_1 = arith.constant 0 : i32
    return %c0_i32, %c0_i32_0 : i32, i32
  }
  func.func @transform_2(%arg0: i32) -> (i32, i32) {
    %c0_i32 = arith.constant 0 : i32
    %c0_i32_0 = arith.constant 0 : i32
    %c0_i32_1 = arith.constant 0 : i32
    return %c0_i32, %c0_i32_0 : i32, i32
  }
  func.func @transform_3(%arg0: i32) -> (i32, i32) {
    %c0_i32 = arith.constant 0 : i32
    %c0_i32_0 = arith.constant 0 : i32
    %c0_i32_1 = arith.constant 0 : i32
    return %c0_i32, %c0_i32_0 : i32, i32
  }
  func.func @transform_4(%arg0: i32) -> (i32, i32) {
    %c0_i32 = arith.constant 0 : i32
    %c0_i32_0 = arith.constant 0 : i32
    %c0_i32_1 = arith.constant 0 : i32
    return %c0_i32, %c0_i32_0 : i32, i32
  }
  func.func @transform_5(%arg0: i32) -> (i32, i32) {
    %c0_i32 = arith.constant 0 : i32
    %c0_i32_0 = arith.constant 0 : i32
    %c0_i32_1 = arith.constant 0 : i32
    return %c0_i32, %c0_i32_0 : i32, i32
  }
  func.func @transform_6(%arg0: i32) -> (i32, i32) {
    %c0_i32 = arith.constant 0 : i32
    %c0_i32_0 = arith.constant 0 : i32
    %c0_i32_1 = arith.constant 0 : i32
    return %c0_i32, %c0_i32_0 : i32, i32
  }
  func.func @transform_7(%arg0: i32) -> (i32, i32) {
    %c0_i32 = arith.constant 0 : i32
    %c0_i32_0 = arith.constant 0 : i32
    %c0_i32_1 = arith.constant 0 : i32
    return %c0_i32, %c0_i32_0 : i32, i32
  }
  func.func @transform_8(%arg0: i32) -> (i32, i32) {
    %c0_i32 = arith.constant 0 : i32
    %c0_i32_0 = arith.constant 0 : i32
    %c0_i32_1 = arith.constant 0 : i32
    return %c0_i32, %c0_i32_0 : i32, i32
  }
  func.func @transform_9(%arg0: i32) -> (i32, i32, i32) {
    %c0_i32 = arith.constant 0 : i32
    %c0_i32_0 = arith.constant 0 : i32
    %c0_i32_1 = arith.constant 0 : i32
    return %arg0, %c0_i32, %c0_i32_0 : i32, i32, i32
  }
  func.func @transform_10(%arg0: i32) -> (i32, i32, i32) {
    %c0_i32 = arith.constant 0 : i32
    %c0_i32_0 = arith.constant 0 : i32
    %c0_i32_1 = arith.constant 0 : i32
    return %arg0, %c0_i32, %c0_i32_0 : i32, i32, i32
  }
}

</mosaic_0001>

<llo_original>
// kernel: aggregation_project_forward.1
$region0: #{aggregation_project_forward.1}
  #allocation0 [shape = 'u32[]', space=smem, size = 0x4, offset = 0x4, fixed_abs, tag = 'smem constant byte address 0x4 - core index']
  #allocation1 [shape = 'u32[144,128]{1,0:T(1,128)}', space=vmem, size = 0x12000, scoped, tag = 'internal scratch']
  #allocation2 [shape = 'f32[1,1]{1,0:T(1,128)S(1)}', space=vmem, size = 0x200, scoped, tag = 'scoped memory for aggregation_project_forward.1']
  %s0 = inlined_call_operand.vmem [shape: f32[8,4,4,256], index: 0, kind: input, shape index: {}]
  %s1 = inlined_call_operand.vmem [shape: f32[4,128], index: 1, kind: input, shape index: {}]
  %s2 = inlined_call_operand.vmem [shape: f32[1,128], index: 2, kind: input, shape index: {}]
  %s3 = inlined_call_operand.vmem [shape: f32[128,64], index: 3, kind: input, shape index: {}]
  %s4 = inlined_call_operand.vmem [shape: f32[1,64], index: 4, kind: input, shape index: {}]
  %s5 = inlined_call_operand.vmem [shape: f32[128,64], index: 5, kind: input, shape index: {}]
  %s6 = inlined_call_operand.vmem [shape: f32[1,64], index: 6, kind: input, shape index: {}]
  %s7 = inlined_call_operand.vmem [shape: f32[64,1], index: 7, kind: input, shape index: {}]
  %s8 = inlined_call_operand.<no memory space> [shape: f32[1,1], index: 8, kind: input, shape index: {}]
  %s9 = inlined_call_operand.vmem [shape: f32[2,4,1], index: 9, kind: output, shape index: {0}]
  %s10 = inlined_call_operand.vmem [shape: f32[2,4,4], index: 10, kind: output, shape index: {1}]
  %11 = xla_tuple %s9, %s10
  %s12 = sld [smem:[#allocation0]]
  $region77: #{aggregation_project_forward.1} parent=0
    _
  %s14 = ssub.s32 1, %s12
  %s15 = scalar_select 0, %s14, %s12
  %v16 = vstv %s8
  %17 = vst [vmem:[#allocation2] sm:$0x1] %v16
  loop: start=0, step=1, limit=4
  $region2: #{aggregation_project_forward.1} parent=0 // loop_pre_header
    _
  $region3: #{aggregation_project_forward.1} parent=0 // loop_header
    %s19 = sphi 0, %s23
    %p20 = scmp.ge.s32.totalorder %s19, 4
    %s29 = sphi 0, %s31
    %s32 = sphi 0, %s29
    %s33 = sphi 0, %s32
    %s49 = sphi 0, %s33
    %s53 = sphi 0, %s53
    %s55 = sphi 0, %s53
    %s56 = sphi 0, %s55
    %s70 = sphi 0, %s56
    %s74 = sphi 0, %s74
    %s76 = sphi 0, %s74
    %s77 = sphi 0, %s76
    %s91 = sphi 0, %s77
    %s95 = sphi 0, %s95
    %s97 = sphi 0, %s95
    %s98 = sphi 0, %s97
    %s112 = sphi 0, %s98
    %s116 = sphi 0, %s116
    %s118 = sphi 0, %s116
    %s119 = sphi 0, %s118
    %s133 = sphi 0, %s119
    %s137 = sphi 0, %s137
    %s139 = sphi 0, %s137
    %s140 = sphi 0, %s139
    %s154 = sphi 0, %s140
    %s158 = sphi 0, %s158
    %s160 = sphi 0, %s158
    %s161 = sphi 0, %s160
    %s175 = sphi 0, %s161
    %s179 = sphi 0, %s179
    %s181 = sphi 0, %s179
    %s182 = sphi 0, %s181
    %s196 = sphi 0, %s182
    %s200 = sphi 0, %s200
    %s202 = sphi 0, %s200
    %s203 = sphi 0, %s202
    %s217 = sphi 0, %s203
    %s223 = sphi 0, %s225
    %s226 = sphi 0, %s223
    %s227 = sphi 0, %s226
    %s243 = sphi 0, %s227
    %s249 = sphi 0, %s251
    %s252 = sphi 0, %s249
    %s253 = sphi 0, %s252
    %s269 = sphi 0, %s253
  $region4: #{aggregation_project_forward.1} parent=0 // loop_header_branch
    %22 = sbr.rel (%p20) target = $region8
  $region5: #{aggregation_project_forward.1} parent=0 // loop_body
    %s24 = ssub.s32 %s19, 1
    %s25 = ssub.s32 %s19, 2
    %s26 = sadd.s32 %s19, 1
    %s27 = ssub.s32 %s19, %s26
    %p28 = scmp.eq.s32.totalorder %s27, 0
    %s30 = sadd.s32 %s29, 1
    %s31 = scalar_select %p28, %s29, %s30
    %p34 = pneg %p28
    %p35 = scmp.eq.s32.totalorder %s19, 1
    %p36 = por %p34, %p35
    %p37 = scmp.ne.s32.totalorder %s29, %s32
    %p38 = scmp.eq.s32.totalorder %s19, 0
    %p39 = por %p37, %p38
    %p40 = scmp.ne.s32.totalorder %s29, %s32
    %p41 = scmp.eq.s32.totalorder %s24, 1
    %p42 = por %p40, %p41
    %p43 = scmp.ne.s32.totalorder %s32, %s33
    %p44 = scmp.eq.s32.totalorder %s24, 0
    %p45 = por %p43, %p44
    %p46 = scmp.ne.s32.totalorder %s32, %s33
    %p47 = scmp.eq.s32.totalorder %s25, 1
    %p48 = por %p46, %p47
    %p50 = scmp.ne.s32.totalorder %s33, %s49
    %p51 = scmp.eq.s32.totalorder %s25, 0
    %p52 = por %p50, %p51
    %s54 = sadd.s32 %s53, 1
    %p57 = scmp.eq.s32.totalorder %s19, 1
    %p58 = scmp.ne.s32.totalorder %s53, %s55
    %p59 = scmp.eq.s32.totalorder %s19, 0
    %p60 = por %p58, %p59
    %p61 = scmp.ne.s32.totalorder %s53, %s55
    %p62 = scmp.eq.s32.totalorder %s24, 1
    %p63 = por %p61, %p62
    %p64 = scmp.ne.s32.totalorder %s55, %s56
    %p65 = scmp.eq.s32.totalorder %s24, 0
    %p66 = por %p64, %p65
    %p67 = scmp.ne.s32.totalorder %s55, %s56
    %p68 = scmp.eq.s32.totalorder %s25, 1
    %p69 = por %p67, %p68
    %p71 = scmp.ne.s32.totalorder %s56, %s70
    %p72 = scmp.eq.s32.totalorder %s25, 0
    %p73 = por %p71, %p72
    %s75 = sadd.s32 %s74, 1
    %p78 = scmp.eq.s32.totalorder %s19, 1
    %p79 = scmp.ne.s32.totalorder %s74, %s76
    %p80 = scmp.eq.s32.totalorder %s19, 0
    %p81 = por %p79, %p80
    %p82 = scmp.ne.s32.totalorder %s74, %s76
    %p83 = scmp.eq.s32.totalorder %s24, 1
    %p84 = por %p82, %p83
    %p85 = scmp.ne.s32.totalorder %s76, %s77
    %p86 = scmp.eq.s32.totalorder %s24, 0
    %p87 = por %p85, %p86
    %p88 = scmp.ne.s32.totalorder %s76, %s77
    %p89 = scmp.eq.s32.totalorder %s25, 1
    %p90 = por %p88, %p89
    %p92 = scmp.ne.s32.totalorder %s77, %s91
    %p93 = scmp.eq.s32.totalorder %s25, 0
    %p94 = por %p92, %p93
    %s96 = sadd.s32 %s95, 1
    %p99 = scmp.eq.s32.totalorder %s19, 1
    %p100 = scmp.ne.s32.totalorder %s95, %s97
    %p101 = scmp.eq.s32.totalorder %s19, 0
    %p102 = por %p100, %p101
    %p103 = scmp.ne.s32.totalorder %s95, %s97
    %p104 = scmp.eq.s32.totalorder %s24, 1
    %p105 = por %p103, %p104
    %p106 = scmp.ne.s32.totalorder %s97, %s98
    %p107 = scmp.eq.s32.totalorder %s24, 0
    %p108 = por %p106, %p107
    %p109 = scmp.ne.s32.totalorder %s97, %s98
    %p110 = scmp.eq.s32.totalorder %s25, 1
    %p111 = por %p109, %p110
    %p113 = scmp.ne.s32.totalorder %s98, %s112
    %p114 = scmp.eq.s32.totalorder %s25, 0
    %p115 = por %p113, %p114
    %s117 = sadd.s32 %s116, 1
    %p120 = scmp.eq.s32.totalorder %s19, 1
    %p121 = scmp.ne.s32.totalorder %s116, %s118
    %p122 = scmp.eq.s32.totalorder %s19, 0
    %p123 = por %p121, %p122
    %p124 = scmp.ne.s32.totalorder %s116, %s118
    %p125 = scmp.eq.s32.totalorder %s24, 1
    %p126 = por %p124, %p125
    %p127 = scmp.ne.s32.totalorder %s118, %s119
    %p128 = scmp.eq.s32.totalorder %s24, 0
    %p129 = por %p127, %p128
    %p130 = scmp.ne.s32.totalorder %s118, %s119
    %p131 = scmp.eq.s32.totalorder %s25, 1
    %p132 = por %p130, %p131
    %p134 = scmp.ne.s32.totalorder %s119, %s133
    %p135 = scmp.eq.s32.totalorder %s25, 0
    %p136 = por %p134, %p135
    %s138 = sadd.s32 %s137, 1
    %p141 = scmp.eq.s32.totalorder %s19, 1
    %p142 = scmp.ne.s32.totalorder %s137, %s139
    %p143 = scmp.eq.s32.totalorder %s19, 0
    %p144 = por %p142, %p143
    %p145 = scmp.ne.s32.totalorder %s137, %s139
    %p146 = scmp.eq.s32.totalorder %s24, 1
    %p147 = por %p145, %p146
    %p148 = scmp.ne.s32.totalorder %s139, %s140
    %p149 = scmp.eq.s32.totalorder %s24, 0
    %p150 = por %p148, %p149
    %p151 = scmp.ne.s32.totalorder %s139, %s140
    %p152 = scmp.eq.s32.totalorder %s25, 1
    %p153 = por %p151, %p152
    %p155 = scmp.ne.s32.totalorder %s140, %s154
    %p156 = scmp.eq.s32.totalorder %s25, 0
    %p157 = por %p155, %p156
    %s159 = sadd.s32 %s158, 1
    %p162 = scmp.eq.s32.totalorder %s19, 1
    %p163 = scmp.ne.s32.totalorder %s158, %s160
    %p164 = scmp.eq.s32.totalorder %s19, 0
    %p165 = por %p163, %p164
    %p166 = scmp.ne.s32.totalorder %s158, %s160
    %p167 = scmp.eq.s32.totalorder %s24, 1
    %p168 = por %p166, %p167
    %p169 = scmp.ne.s32.totalorder %s160, %s161
    %p170 = scmp.eq.s32.totalorder %s24, 0
    %p171 = por %p169, %p170
    %p172 = scmp.ne.s32.totalorder %s160, %s161
    %p173 = scmp.eq.s32.totalorder %s25, 1
    %p174 = por %p172, %p173
    %p176 = scmp.ne.s32.totalorder %s161, %s175
    %p177 = scmp.eq.s32.totalorder %s25, 0
    %p178 = por %p176, %p177
    %s180 = sadd.s32 %s179, 1
    %p183 = scmp.eq.s32.totalorder %s19, 1
    %p184 = scmp.ne.s32.totalorder %s179, %s181
    %p185 = scmp.eq.s32.totalorder %s19, 0
    %p186 = por %p184, %p185
    %p187 = scmp.ne.s32.totalorder %s179, %s181
    %p188 = scmp.eq.s32.totalorder %s24, 1
    %p189 = por %p187, %p188
    %p190 = scmp.ne.s32.totalorder %s181, %s182
    %p191 = scmp.eq.s32.totalorder %s24, 0
    %p192 = por %p190, %p191
    %p193 = scmp.ne.s32.totalorder %s181, %s182
    %p194 = scmp.eq.s32.totalorder %s25, 1
    %p195 = por %p193, %p194
    %p197 = scmp.ne.s32.totalorder %s182, %s196
    %p198 = scmp.eq.s32.totalorder %s25, 0
    %p199 = por %p197, %p198
    %s201 = sadd.s32 %s200, 1
    %p204 = scmp.eq.s32.totalorder %s19, 1
    %p205 = scmp.ne.s32.totalorder %s200, %s202
    %p206 = scmp.eq.s32.totalorder %s19, 0
    %p207 = por %p205, %p206
    %p208 = scmp.ne.s32.totalorder %s200, %s202
    %p209 = scmp.eq.s32.totalorder %s24, 1
    %p210 = por %p208, %p209
    %p211 = scmp.ne.s32.totalorder %s202, %s203
    %p212 = scmp.eq.s32.totalorder %s24, 0
    %p213 = por %p211, %p212
    %p214 = scmp.ne.s32.totalorder %s202, %s203
    %p215 = scmp.eq.s32.totalorder %s25, 1
    %p216 = por %p214, %p215
    %p218 = scmp.ne.s32.totalorder %s203, %s217
    %p219 = scmp.eq.s32.totalorder %s25, 0
    %p220 = por %p218, %p219
    %s221 = ssub.s32 %s19, %s26
    %p222 = scmp.eq.s32.totalorder %s221, 0
    %s224 = sadd.s32 %s223, 1
    %s225 = scalar_select %p222, %s223, %s224
    %p228 = pneg %p222
    %p229 = scmp.eq.s32.totalorder %s19, 1
    %p230 = por %p228, %p229
    %p231 = scmp.ne.s32.totalorder %s223, %s226
    %p232 = scmp.eq.s32.totalorder %s19, 0
    %p233 = por %p231, %p232
    %p234 = scmp.ne.s32.totalorder %s223, %s226
    %p235 = scmp.eq.s32.totalorder %s24, 1
    %p236 = por %p234, %p235
    %p237 = scmp.ne.s32.totalorder %s226, %s227
    %p238 = scmp.eq.s32.totalorder %s24, 0
    %p239 = por %p237, %p238
    %p240 = scmp.ne.s32.totalorder %s226, %s227
    %p241 = scmp.eq.s32.totalorder %s25, 1
    %p242 = por %p240, %p241
    %p244 = scmp.ne.s32.totalorder %s227, %s243
    %p245 = scmp.eq.s32.totalorder %s25, 0
    %p246 = por %p244, %p245
    %s247 = ssub.s32 %s19, %s26
    %p248 = scmp.eq.s32.totalorder %s247, 0
    %s250 = sadd.s32 %s249, 1
    %s251 = scalar_select %p248, %s249, %s250
    %p254 = pneg %p248
    %p255 = scmp.eq.s32.totalorder %s19, 1
    %p256 = por %p254, %p255
    %p257 = scmp.ne.s32.totalorder %s249, %s252
    %p258 = scmp.eq.s32.totalorder %s19, 0
    %p259 = por %p257, %p258
    %p260 = scmp.ne.s32.totalorder %s249, %s252
    %p261 = scmp.eq.s32.totalorder %s24, 1
    %p262 = por %p260, %p261
    %p263 = scmp.ne.s32.totalorder %s252, %s253
    %p264 = scmp.eq.s32.totalorder %s24, 0
    %p265 = por %p263, %p264
    %p266 = scmp.ne.s32.totalorder %s252, %s253
    %p267 = scmp.eq.s32.totalorder %s25, 1
    %p268 = por %p266, %p267
    %p270 = scmp.ne.s32.totalorder %s253, %s269
    %p271 = scmp.eq.s32.totalorder %s25, 0
    %p272 = por %p270, %p271
    %p273 = scmp.le.s32.totalorder 1, %s19
    %p274 = scmp.lt.s32.totalorder %s19, 3
    %p275 = pnand %p273, %p274
    %p276 = pneg %p275
    // Predicated region
    $region9: #{aggregation_project_forward.1} parent=5 // pred_check
      _
    $region10: #{aggregation_project_forward.1} parent=5 // pred_check_branch
      %278 = sbr.rel (%p275) target = $region12
    $region11: #{aggregation_project_forward.1} parent=5 // pred_region
      %s279 = ssub.s32 %s19, 1
      // Predicated region
      $region13: #{aggregation_project_forward.1} parent=11 // pred_check
        %p280 = pneg %p66
      $region14: #{aggregation_project_forward.1} parent=11 // pred_check_branch
        %282 = sbr.rel (%p280) target = $region16
      $region15: #{aggregation_project_forward.1} parent=11 // pred_region
        _
      $region16: #{aggregation_project_forward.1} parent=11 // pred_fallthru
        _
      // Predicated region
      $region17: #{aggregation_project_forward.1} parent=11 // pred_check
        %p283 = pneg %p87
      $region18: #{aggregation_project_forward.1} parent=11 // pred_check_branch
        %285 = sbr.rel (%p283) target = $region20
      $region19: #{aggregation_project_forward.1} parent=11 // pred_region
        _
      $region20: #{aggregation_project_forward.1} parent=11 // pred_fallthru
        _
      // Predicated region
      $region21: #{aggregation_project_forward.1} parent=11 // pred_check
        %p286 = pneg %p108
      $region22: #{aggregation_project_forward.1} parent=11 // pred_check_branch
        %288 = sbr.rel (%p286) target = $region24
      $region23: #{aggregation_project_forward.1} parent=11 // pred_region
        _
      $region24: #{aggregation_project_forward.1} parent=11 // pred_fallthru
        _
      // Predicated region
      $region25: #{aggregation_project_forward.1} parent=11 // pred_check
        %p289 = pneg %p129
      $region26: #{aggregation_project_forward.1} parent=11 // pred_check_branch
        %291 = sbr.rel (%p289) target = $region28
      $region27: #{aggregation_project_forward.1} parent=11 // pred_region
        _
      $region28: #{aggregation_project_forward.1} parent=11 // pred_fallthru
        _
      // Predicated region
      $region29: #{aggregation_project_forward.1} parent=11 // pred_check
        %p292 = pneg %p150
      $region30: #{aggregation_project_forward.1} parent=11 // pred_check_branch
        %294 = sbr.rel (%p292) target = $region32
      $region31: #{aggregation_project_forward.1} parent=11 // pred_region
        _
      $region32: #{aggregation_project_forward.1} parent=11 // pred_fallthru
        _
      // Predicated region
      $region33: #{aggregation_project_forward.1} parent=11 // pred_check
        %p295 = pneg %p171
      $region34: #{aggregation_project_forward.1} parent=11 // pred_check_branch
        %297 = sbr.rel (%p295) target = $region36
      $region35: #{aggregation_project_forward.1} parent=11 // pred_region
        _
      $region36: #{aggregation_project_forward.1} parent=11 // pred_fallthru
        _
      // Predicated region
      $region37: #{aggregation_project_forward.1} parent=11 // pred_check
        %p298 = pneg %p192
      $region38: #{aggregation_project_forward.1} parent=11 // pred_check_branch
        %300 = sbr.rel (%p298) target = $region40
      $region39: #{aggregation_project_forward.1} parent=11 // pred_region
        _
      $region40: #{aggregation_project_forward.1} parent=11 // pred_fallthru
        _
      // Predicated region
      $region41: #{aggregation_project_forward.1} parent=11 // pred_check
        %p301 = pneg %p213
      $region42: #{aggregation_project_forward.1} parent=11 // pred_check_branch
        %303 = sbr.rel (%p301) target = $region44
      $region43: #{aggregation_project_forward.1} parent=11 // pred_region
        _
      $region44: #{aggregation_project_forward.1} parent=11 // pred_fallthru
        _
    $region12: #{aggregation_project_forward.1} parent=5 // pred_fallthru
      _
    %p304 = scmp.lt.s32.totalorder %s19, 2
    // Predicated region
    $region45: #{aggregation_project_forward.1} parent=5 // pred_check
      %p305 = pneg %p304
    $region46: #{aggregation_project_forward.1} parent=5 // pred_check_branch
      %307 = sbr.rel (%p305) target = $region48
    $region47: #{aggregation_project_forward.1} parent=5 // pred_region
      // Predicated region
      $region49: #{aggregation_project_forward.1} parent=47 // pred_check
        %p308 = pneg %p39
      $region50: #{aggregation_project_forward.1} parent=47 // pred_check_branch
        %310 = sbr.rel (%p308) target = $region52
      $region51: #{aggregation_project_forward.1} parent=47 // pred_region
        %s311 = smul.u32 4, %s19
        %p312 = scmp.lt.s32.totalorder %s311, 7
        %s313 = scalar_select %p312, %s311, 7
        %s314 = smul.addr %s313, 8
        %s315 = smul.addr %s314, 4
        %s316 = scalar_lea.vmem %s0, %s315
        %s317 = smul.u32 4, %s19
      $region52: #{aggregation_project_forward.1} parent=47 // pred_fallthru
        _
    $region48: #{aggregation_project_forward.1} parent=5 // pred_fallthru
      _
    %p318 = scmp.le.s32.totalorder 1, %s19
    %p319 = scmp.lt.s32.totalorder %s19, 3
    %p320 = pnand %p318, %p319
    %p321 = pneg %p320
    // Predicated region
    $region53: #{aggregation_project_forward.1} parent=5 // pred_check
      _
    $region54: #{aggregation_project_forward.1} parent=5 // pred_check_branch
      %323 = sbr.rel (%p320) target = $region56
    $region55: #{aggregation_project_forward.1} parent=5 // pred_region
      %s324 = ssub.s32 %s19, 1
      %s325 = smul.u32 4, %s24
      %p326 = scmp.lt.s32.totalorder %s325, 7
      %s327 = scalar_select %p326, %s325, 7
      %s328 = smul.addr %s327, 8
      %s329 = smul.addr %s328, 4
      %s330 = scalar_lea.vmem %s0, %s329
      %p331 = pneg %p45
      %p332 = pneg %p42
      %p333 = pneg %p66
      %p334 = pneg %p63
      %p335 = pneg %p87
      %p336 = pneg %p84
      %p337 = pneg %p108
      %p338 = pneg %p105
      %p339 = pneg %p129
      %p340 = pneg %p126
      %p341 = pneg %p150
      %p342 = pneg %p147
      %p343 = pneg %p171
      %p344 = pneg %p168
      %p345 = pneg %p192
      %p346 = pneg %p189
      %p347 = pneg %p213
      %p348 = pneg %p210
      %p349 = pneg %p239
      %p350 = pneg %p236
      %p351 = scmp.lt.s32.totalorder %s24, 1
      %s352 = scalar_select %p351, %s24, 1
      %s353 = smul.addr %s352, 4
      %s354 = scalar_lea.vmem %s9, %s353
      %p355 = pneg %p265
      %p356 = pneg %p262
      %p357 = scmp.lt.s32.totalorder %s24, 1
      %s358 = scalar_select %p357, %s24, 1
      %s359 = smul.addr %s358, 4
      %s360 = scalar_lea.vmem %s10, %s359
      %s361 = smul.u32 4, %s24
      %p362 = scmp.lt.s32.totalorder %s361, 7
      %s363 = scalar_select %p362, %s361, 7
      %s364 = smul.addr %s363, 8
      %s365 = smul.addr %s364, 4
      %s366 = scalar_lea.vmem %s0, %s365
      %s367 = smul.u32 4, %s24
      %p368 = scmp.lt.s32.totalorder %s24, 1
      %s369 = scalar_select %p368, %s24, 1
      %s370 = smul.addr %s369, 4
      %s371 = scalar_lea.vmem %s9, %s370
      %p372 = scmp.lt.s32.totalorder %s24, 1
      %s373 = scalar_select %p372, %s24, 1
      %s374 = smul.addr %s373, 4
      %s375 = scalar_lea.vmem %s10, %s374
      %v376 = vld [vmem:[%s366] sm:$0xff]
      %v377 = vld [vmem:[%s366 + $0x8] sm:$0xff]
      %v378 = vld [vmem:[%s366 + $0x10] sm:$0xff]
      %v379 = vld [vmem:[%s366 + $0x18] sm:$0xff]
      %v380 = vld [vmem:[%s366 + $0x20] sm:$0xff]
      %v381 = vld [vmem:[%s366 + $0x28] sm:$0xff]
      %v382 = vld [vmem:[%s366 + $0x30] sm:$0xff]
      %v383 = vld [vmem:[%s366 + $0x38] sm:$0xff]
      %v384 = vld [vmem:[%s366 + $0x40] sm:$0xff]
      %v385 = vld [vmem:[%s366 + $0x48] sm:$0xff]
      %v386 = vld [vmem:[%s366 + $0x50] sm:$0xff]
      %v387 = vld [vmem:[%s366 + $0x58] sm:$0xff]
      %v388 = vld [vmem:[%s366 + $0x60] sm:$0xff]
      %v389 = vld [vmem:[%s366 + $0x68] sm:$0xff]
      %v390 = vld [vmem:[%s366 + $0x70] sm:$0xff]
      %v391 = vld [vmem:[%s366 + $0x78] sm:$0xff]
      %v408 = vcombine.high %v376, %v376
      %v409 = vcombine.high %v377, %v377
      %v410 = vcombine.high %v378, %v378
      %v411 = vcombine.high %v379, %v379
      %v412 = vcombine.high %v380, %v380
      %v413 = vcombine.high %v381, %v381
      %v414 = vcombine.high %v382, %v382
      %v415 = vcombine.high %v383, %v383
      %v416 = vcombine.high %v384, %v384
      %v417 = vcombine.high %v385, %v385
      %v418 = vcombine.high %v386, %v386
      %v419 = vcombine.high %v387, %v387
      %v420 = vcombine.high %v388, %v388
      %v421 = vcombine.high %v389, %v389
      %v422 = vcombine.high %v390, %v390
      %v423 = vcombine.high %v391, %v391
      %vm440 = vcmask 1043456
      %v441 = vsel %vm440, %v376, 0.0
      %v442 = vsel %vm440, %v408, 0.0
      %v443 = vadd.f32 %v441, %v442
      %444 = vadd.xlane.f32.xlu0 %v443
      %v445 = vpop.xlane.xlu0 %444
      %v446 = vsel %vm440, %v377, 0.0
      %v447 = vsel %vm440, %v409, 0.0
      %v448 = vadd.f32 %v446, %v447
      %449 = vadd.xlane.f32.xlu0 %v448
      %v450 = vpop.xlane.xlu0 %449
      %v451 = vsel %vm440, %v378, 0.0
      %v452 = vsel %vm440, %v410, 0.0
      %v453 = vadd.f32 %v451, %v452
      %454 = vadd.xlane.f32.xlu0 %v453
      %v455 = vpop.xlane.xlu0 %454
      %v456 = vsel %vm440, %v379, 0.0
      %v457 = vsel %vm440, %v411, 0.0
      %v458 = vadd.f32 %v456, %v457
      %459 = vadd.xlane.f32.xlu0 %v458
      %v460 = vpop.xlane.xlu0 %459
      %v461 = vsel %vm440, %v380, 0.0
      %v462 = vsel %vm440, %v412, 0.0
      %v463 = vadd.f32 %v461, %v462
      %464 = vadd.xlane.f32.xlu0 %v463
      %v465 = vpop.xlane.xlu0 %464
      %v466 = vsel %vm440, %v381, 0.0
      %v467 = vsel %vm440, %v413, 0.0
      %v468 = vadd.f32 %v466, %v467
      %469 = vadd.xlane.f32.xlu0 %v468
      %v470 = vpop.xlane.xlu0 %469
      %v471 = vsel %vm440, %v382, 0.0
      %v472 = vsel %vm440, %v414, 0.0
      %v473 = vadd.f32 %v471, %v472
      %474 = vadd.xlane.f32.xlu0 %v473
      %v475 = vpop.xlane.xlu0 %474
      %v476 = vsel %vm440, %v383, 0.0
      %v477 = vsel %vm440, %v415, 0.0
      %v478 = vadd.f32 %v476, %v477
      %479 = vadd.xlane.f32.xlu0 %v478
      %v480 = vpop.xlane.xlu0 %479
      %v481 = vsel %vm440, %v384, 0.0
      %v482 = vsel %vm440, %v416, 0.0
      %v483 = vadd.f32 %v481, %v482
      %484 = vadd.xlane.f32.xlu0 %v483
      %v485 = vpop.xlane.xlu0 %484
      %v486 = vsel %vm440, %v385, 0.0
      %v487 = vsel %vm440, %v417, 0.0
      %v488 = vadd.f32 %v486, %v487
      %489 = vadd.xlane.f32.xlu0 %v488
      %v490 = vpop.xlane.xlu0 %489
      %v491 = vsel %vm440, %v386, 0.0
      %v492 = vsel %vm440, %v418, 0.0
      %v493 = vadd.f32 %v491, %v492
      %494 = vadd.xlane.f32.xlu0 %v493
      %v495 = vpop.xlane.xlu0 %494
      %v496 = vsel %vm440, %v387, 0.0
      %v497 = vsel %vm440, %v419, 0.0
      %v498 = vadd.f32 %v496, %v497
      %499 = vadd.xlane.f32.xlu0 %v498
      %v500 = vpop.xlane.xlu0 %499
      %v501 = vsel %vm440, %v388, 0.0
      %v502 = vsel %vm440, %v420, 0.0
      %v503 = vadd.f32 %v501, %v502
      %504 = vadd.xlane.f32.xlu0 %v503
      %v505 = vpop.xlane.xlu0 %504
      %v506 = vsel %vm440, %v389, 0.0
      %v507 = vsel %vm440, %v421, 0.0
      %v508 = vadd.f32 %v506, %v507
      %509 = vadd.xlane.f32.xlu0 %v508
      %v510 = vpop.xlane.xlu0 %509
      %v511 = vsel %vm440, %v390, 0.0
      %v512 = vsel %vm440, %v422, 0.0
      %v513 = vadd.f32 %v511, %v512
      %514 = vadd.xlane.f32.xlu0 %v513
      %v515 = vpop.xlane.xlu0 %514
      %v516 = vsel %vm440, %v391, 0.0
      %v517 = vsel %vm440, %v423, 0.0
      %v518 = vadd.f32 %v516, %v517
      %519 = vadd.xlane.f32.xlu0 %v518
      %v520 = vpop.xlane.xlu0 %519
      %v521 = vmul.f32 %v445, 0.00390625
      %v522 = vmul.f32 %v450, 0.00390625
      %v523 = vmul.f32 %v455, 0.00390625
      %v524 = vmul.f32 %v460, 0.00390625
      %v525 = vmul.f32 %v465, 0.00390625
      %v526 = vmul.f32 %v470, 0.00390625
      %v527 = vmul.f32 %v475, 0.00390625
      %v528 = vmul.f32 %v480, 0.00390625
      %v529 = vmul.f32 %v485, 0.00390625
      %v530 = vmul.f32 %v490, 0.00390625
      %v531 = vmul.f32 %v495, 0.00390625
      %v532 = vmul.f32 %v500, 0.00390625
      %v533 = vmul.f32 %v505, 0.00390625
      %v534 = vmul.f32 %v510, 0.00390625
      %v535 = vmul.f32 %v515, 0.00390625
      %v536 = vmul.f32 %v520, 0.00390625
      %v537 = vld [vmem:[%s1] sm:$0xf]
      %v538 = vld [vmem:[%s2] sm:$0x1]
      %v540 = vlaneseq
      %v541 = vshrl.u32 %v540, 7
      %v542 = vsub.s32 0, %v541
      %v543 = vrot.slane %v538, %v542
      %v561 = vlaneseq
      %v562 = vand.u32 %v561, 127
      %v563 = vlaneseq
      %v564 = vshrl.u32 %v563, 7
      %v565 = vsub.s32 %v562, %v564
      %v566 = vrot.slane %v521, %v565
      %v567 = vlaneseq
      %v568 = vshrl.u32 %v567, 7
      %v569 = vsub.s32 %v562, %v568
      %v570 = vrot.slane %v522, %v569
      %v571 = vlaneseq
      %v572 = vshrl.u32 %v571, 7
      %v573 = vsub.s32 %v562, %v572
      %v574 = vrot.slane %v523, %v573
      %v575 = vlaneseq
      %v576 = vshrl.u32 %v575, 7
      %v577 = vsub.s32 %v562, %v576
      %v578 = vrot.slane %v524, %v577
      %v579 = vlaneseq
      %v580 = vshrl.u32 %v579, 7
      %v581 = vsub.s32 %v562, %v580
      %v582 = vrot.slane %v525, %v581
      %v583 = vlaneseq
      %v584 = vshrl.u32 %v583, 7
      %v585 = vsub.s32 %v562, %v584
      %v586 = vrot.slane %v526, %v585
      %v587 = vlaneseq
      %v588 = vshrl.u32 %v587, 7
      %v589 = vsub.s32 %v562, %v588
      %v590 = vrot.slane %v527, %v589
      %v591 = vlaneseq
      %v592 = vshrl.u32 %v591, 7
      %v593 = vsub.s32 %v562, %v592
      %v594 = vrot.slane %v528, %v593
      %v595 = vlaneseq
      %v596 = vshrl.u32 %v595, 7
      %v597 = vsub.s32 %v562, %v596
      %v598 = vrot.slane %v529, %v597
      %v599 = vlaneseq
      %v600 = vshrl.u32 %v599, 7
      %v601 = vsub.s32 %v562, %v600
      %v602 = vrot.slane %v530, %v601
      %v603 = vlaneseq
      %v604 = vshrl.u32 %v603, 7
      %v605 = vsub.s32 %v562, %v604
      %v606 = vrot.slane %v531, %v605
      %v607 = vlaneseq
      %v608 = vshrl.u32 %v607, 7
      %v609 = vsub.s32 %v562, %v608
      %v610 = vrot.slane %v532, %v609
      %v611 = vlaneseq
      %v612 = vshrl.u32 %v611, 7
      %v613 = vsub.s32 %v562, %v612
      %v614 = vrot.slane %v533, %v613
      %v615 = vlaneseq
      %v616 = vshrl.u32 %v615, 7
      %v617 = vsub.s32 %v562, %v616
      %v618 = vrot.slane %v534, %v617
      %v619 = vlaneseq
      %v620 = vshrl.u32 %v619, 7
      %v621 = vsub.s32 %v562, %v620
      %v622 = vrot.slane %v535, %v621
      %v623 = vlaneseq
      %v624 = vshrl.u32 %v623, 7
      %v625 = vsub.s32 %v562, %v624
      %v626 = vrot.slane %v536, %v625
      %vm627 = vcmask 1041409
      %v628 = vsel %vm627, %v570, %v566
      %vm629 = vcmask 1042434
      %v630 = vsel %vm629, %v574, %v628
      %vm631 = vcmask 1043459
      %v632 = vsel %vm631, %v578, %v630
      %vm633 = vcmask 1044484
      %v634 = vsel %vm633, %v582, %v632
      %vm635 = vcmask 1045509
      %v636 = vsel %vm635, %v586, %v634
      %vm637 = vcmask 1046534
      %v638 = vsel %vm637, %v590, %v636
      %vm639 = vcmask 1047559
      %v640 = vsel %vm639, %v594, %v638
      %v641 = vsel %vm627, %v602, %v598
      %v642 = vsel %vm629, %v606, %v641
      %v643 = vsel %vm631, %v610, %v642
      %v644 = vsel %vm633, %v614, %v643
      %v645 = vsel %vm635, %v618, %v644
      %v646 = vsel %vm637, %v622, %v645
      %v647 = vsel %vm639, %v626, %v646
      %vm648 = vcmask 31744
      %v649 = vsel %vm648, %v640, 0
      %v651 = vsel %vm648, %v647, 0
      %v654 = vsel %vm440, %v537, 0
      %656 = vmatprep.subr.mxu0 0.0
      %657 = vmatpush1.msra.mxu0 0.0
      %658 = vmatprep.subr.mxu0 0.0
      %659 = vmatpush1.msra.mxu0 0.0
      %660 = vmatprep.subr.mxu0 0.0
      %661 = vmatpush1.msra.mxu0 0.0
      %662 = vmatprep.subr.mxu0 0.0
      %663 = vmatpush1.msra.mxu0 0.0
      %664 = vmatprep.subr.mxu0 0.0
      %665 = vmatpush1.msra.mxu0 0.0
      %666 = vmatprep.subr.mxu0 0.0
      %667 = vmatpush1.msra.mxu0 0.0
      %668 = vmatprep.subr.mxu0 0.0
      %669 = vmatpush1.msra.mxu0 0.0
      %670 = vmatprep.subr.mxu0 0.0
      %671 = vmatpush1.msra.mxu0 0.0
      %672 = vmatprep.subr.mxu0 0.0
      %673 = vmatpush1.msra.mxu0 0.0
      %674 = vmatprep.subr.mxu0 0.0
      %675 = vmatpush1.msra.mxu0 0.0
      %676 = vmatprep.subr.mxu0 0.0
      %677 = vmatpush1.msra.mxu0 0.0
      %678 = vmatprep.subr.mxu0 0.0
      %679 = vmatpush1.msra.mxu0 0.0
      %680 = vmatprep.subr.mxu0 0.0
      %681 = vmatpush1.msra.mxu0 0.0
      %682 = vmatprep.subr.mxu0 0.0
      %683 = vmatpush1.msra.mxu0 0.0
      %684 = vmatprep.subr.mxu0 0.0
      %685 = vmatpush1.msra.mxu0 0.0
      %686 = vmatprep.subr.mxu0 0.0
      %687 = vmatpush1.msra.mxu0 %v654
      %688 = vmatprep.subr.mxu0 0.0
      %689 = vmatpush2.msra.mxu0 0.0
      %690 = vmatprep.subr.mxu0 0.0
      %691 = vmatpush2.msra.mxu0 0.0
      %692 = vmatprep.subr.mxu0 0.0
      %693 = vmatpush2.msra.mxu0 0.0
      %694 = vmatprep.subr.mxu0 0.0
      %695 = vmatpush2.msra.mxu0 0.0
      %696 = vmatprep.subr.mxu0 0.0
      %697 = vmatpush2.msra.mxu0 0.0
      %698 = vmatprep.subr.mxu0 0.0
      %699 = vmatpush2.msra.mxu0 0.0
      %700 = vmatprep.subr.mxu0 0.0
      %701 = vmatpush2.msra.mxu0 0.0
      %702 = vmatprep.subr.mxu0 0.0
      %703 = vmatpush2.msra.mxu0 0.0
      %704 = vmatprep.subr.mxu0 0.0
      %705 = vmatpush2.msra.mxu0 0.0
      %706 = vmatprep.subr.mxu0 0.0
      %707 = vmatpush2.msra.mxu0 0.0
      %708 = vmatprep.subr.mxu0 0.0
      %709 = vmatpush2.msra.mxu0 0.0
      %710 = vmatprep.subr.mxu0 0.0
      %711 = vmatpush2.msra.mxu0 0.0
      %712 = vmatprep.subr.mxu0 0.0
      %713 = vmatpush2.msra.mxu0 0.0
      %714 = vmatprep.subr.mxu0 0.0
      %715 = vmatpush2.msra.mxu0 0.0
      %716 = vmatprep.subr.mxu0 0.0
      %717 = vmatpush2.msra.mxu0 0.0
      %718 = vmatprep.subr.mxu0 0.0
      %719 = vmatpush2.msra.mxu0 0.0
      %720 = vmatprep.mubr.f32.mxu0 0.0
      %721 = vmatmul.mubr.f32.gmra.mxu0 %v649
      %v722 = vpop.f32.mrf.mxu0
      %v723 = vadd.f32 %v543, %v722
      %v724 = vpop.f32.mrf.mxu0
      %725 = vmatprep.mubr.f32.mxu0 0.0
      %726 = vmatmul.mubr.f32.gmra.mxu0 %v651
      %v727 = vpop.f32.mrf.mxu0
      %v728 = vadd.f32 %v543, %v727
      %v729 = vpop.f32.mrf.mxu0
      %730 = vdwg.mxu0
      %v731 = vmax.f32 %v723, 0.0
      %v732 = vmax.f32 %v728, 0.0
      %v733 = vld [vmem:[%s3] sm:$0xff]
      %v734 = vld [vmem:[%s3 + $0x8] sm:$0xff]
      %v735 = vld [vmem:[%s3 + $0x10] sm:$0xff]
      %v736 = vld [vmem:[%s3 + $0x18] sm:$0xff]
      %v737 = vld [vmem:[%s3 + $0x20] sm:$0xff]
      %v738 = vld [vmem:[%s3 + $0x28] sm:$0xff]
      %v739 = vld [vmem:[%s3 + $0x30] sm:$0xff]
      %v740 = vld [vmem:[%s3 + $0x38] sm:$0xff]
      %v741 = vld [vmem:[%s3 + $0x40] sm:$0xff]
      %v742 = vld [vmem:[%s3 + $0x48] sm:$0xff]
      %v743 = vld [vmem:[%s3 + $0x50] sm:$0xff]
      %v744 = vld [vmem:[%s3 + $0x58] sm:$0xff]
      %v745 = vld [vmem:[%s3 + $0x60] sm:$0xff]
      %v746 = vld [vmem:[%s3 + $0x68] sm:$0xff]
      %v747 = vld [vmem:[%s3 + $0x70] sm:$0xff]
      %v748 = vld [vmem:[%s3 + $0x78] sm:$0xff]
      %749 = vmatprep.subr.mxu0 0.0
      %750 = vmatpush1.msra.mxu0 %v748
      %751 = vmatprep.subr.mxu0 0.0
      %752 = vmatpush1.msra.mxu0 %v747
      %753 = vmatprep.subr.mxu0 0.0
      %754 = vmatpush1.msra.mxu0 %v746
      %755 = vmatprep.subr.mxu0 0.0
      %756 = vmatpush1.msra.mxu0 %v745
      %757 = vmatprep.subr.mxu0 0.0
      %758 = vmatpush1.msra.mxu0 %v744
      %759 = vmatprep.subr.mxu0 0.0
      %760 = vmatpush1.msra.mxu0 %v743
      %761 = vmatprep.subr.mxu0 0.0
      %762 = vmatpush1.msra.mxu0 %v742
      %763 = vmatprep.subr.mxu0 0.0
      %764 = vmatpush1.msra.mxu0 %v741
      %765 = vmatprep.subr.mxu0 0.0
      %766 = vmatpush1.msra.mxu0 %v740
      %767 = vmatprep.subr.mxu0 0.0
      %768 = vmatpush1.msra.mxu0 %v739
      %769 = vmatprep.subr.mxu0 0.0
      %770 = vmatpush1.msra.mxu0 %v738
      %771 = vmatprep.subr.mxu0 0.0
      %772 = vmatpush1.msra.mxu0 %v737
      %773 = vmatprep.subr.mxu0 0.0
      %774 = vmatpush1.msra.mxu0 %v736
      %775 = vmatprep.subr.mxu0 0.0
      %776 = vmatpush1.msra.mxu0 %v735
      %777 = vmatprep.subr.mxu0 0.0
      %778 = vmatpush1.msra.mxu0 %v734
      %779 = vmatprep.subr.mxu0 0.0
      %780 = vmatpush1.msra.mxu0 %v733
      %781 = vmatprep.subr.mxu0 0.0
      %782 = vmatpush2.msra.mxu0 0.0
      %783 = vmatprep.subr.mxu0 0.0
      %784 = vmatpush2.msra.mxu0 0.0
      %785 = vmatprep.subr.mxu0 0.0
      %786 = vmatpush2.msra.mxu0 0.0
      %787 = vmatprep.subr.mxu0 0.0
      %788 = vmatpush2.msra.mxu0 0.0
      %789 = vmatprep.subr.mxu0 0.0
      %790 = vmatpush2.msra.mxu0 0.0
      %791 = vmatprep.subr.mxu0 0.0
      %792 = vmatpush2.msra.mxu0 0.0
      %793 = vmatprep.subr.mxu0 0.0
      %794 = vmatpush2.msra.mxu0 0.0
      %795 = vmatprep.subr.mxu0 0.0
      %796 = vmatpush2.msra.mxu0 0.0
      %797 = vmatprep.subr.mxu0 0.0
      %798 = vmatpush2.msra.mxu0 0.0
      %799 = vmatprep.subr.mxu0 0.0
      %800 = vmatpush2.msra.mxu0 0.0
      %801 = vmatprep.subr.mxu0 0.0
      %802 = vmatpush2.msra.mxu0 0.0
      %803 = vmatprep.subr.mxu0 0.0
      %804 = vmatpush2.msra.mxu0 0.0
      %805 = vmatprep.subr.mxu0 0.0
      %806 = vmatpush2.msra.mxu0 0.0
      %807 = vmatprep.subr.mxu0 0.0
      %808 = vmatpush2.msra.mxu0 0.0
      %809 = vmatprep.subr.mxu0 0.0
      %810 = vmatpush2.msra.mxu0 0.0
      %811 = vmatprep.subr.mxu0 0.0
      %812 = vmatpush2.msra.mxu0 0.0
      %813 = vmatprep.mubr.f32.mxu0 0.0
      %814 = vmatmul.mubr.f32.gmra.mxu0 %v731
      %v815 = vpop.f32.mrf.mxu0
      %v816 = vadd.f32 0.0, %v815
      %v817 = vpop.f32.mrf.mxu0
      %818 = vmatprep.mubr.f32.mxu0 0.0
      %819 = vmatmul.mubr.f32.gmra.mxu0 %v732
      %v820 = vpop.f32.mrf.mxu0
      %v821 = vadd.f32 0.0, %v820
      %v822 = vpop.f32.mrf.mxu0
      %823 = vdwg.mxu0
      %v824 = vtanh.pop %v816
      %v825 = vtanh.pop %v821
      %v828 = vcombine.high %v824, %v824
      %v829 = vcombine.high %v825, %v825
      %v832 = vld [vmem:[%s4] sm:$0x1]
      %v834 = vlaneseq
      %v835 = vshrl.u32 %v834, 7
      %v836 = vsub.s32 0, %v835
      %v837 = vrot.slane %v832, %v836
      %v839 = vmul.f32 %v824, %v837
      %v840 = vmul.f32 %v828, %v837
      %v841 = vmul.f32 %v825, %v837
      %v842 = vmul.f32 %v829, %v837
      %vm843 = vcmask 519168
      %v844 = vsel %vm843, %v839, 0.0
      %845 = vadd.xlane.f32.xlu0 %v844
      %v846 = vpop.xlane.xlu0 %845
      %v847 = vsel %vm843, %v840, 0.0
      %848 = vadd.xlane.f32.xlu0 %v847
      %v849 = vpop.xlane.xlu0 %848
      %v850 = vsel %vm843, %v841, 0.0
      %851 = vadd.xlane.f32.xlu0 %v850
      %v852 = vpop.xlane.xlu0 %851
      %v853 = vsel %vm843, %v842, 0.0
      %854 = vadd.xlane.f32.xlu0 %v853
      %v855 = vpop.xlane.xlu0 %854
      %v860 = vlaneseq
      %v861 = vshrl.u32 %v860, 7
      %v862 = vsub.s32 %v562, %v861
      %v863 = vrot.slane %v846, %v862
      %v864 = vlaneseq
      %v865 = vshrl.u32 %v864, 7
      %v866 = vsub.s32 %v562, %v865
      %v867 = vrot.slane %v849, %v866
      %v868 = vlaneseq
      %v869 = vshrl.u32 %v868, 7
      %v870 = vsub.s32 %v562, %v869
      %v871 = vrot.slane %v852, %v870
      %v872 = vlaneseq
      %v873 = vshrl.u32 %v872, 7
      %v874 = vsub.s32 %v562, %v873
      %v875 = vrot.slane %v855, %v874
      %v876 = vsel %vm627, %v867, %v863
      %v877 = vsel %vm629, %v871, %v876
      %v878 = vsel %vm631, %v875, %v877
      %vm880 = vcmask 27648
      %v881 = vsel %vm880, %v878, -inf
      %882 = vmax.xlane.f32.xlu0 %v881
      %v883 = vpop.xlane.xlu0 %882
      %v885 = vlaneseq
      %v886 = vshrl.u32 %v885, 7
      %v887 = vsub.s32 0, %v886
      %v888 = vrot.slane %v883, %v887
      %v889 = vlaneseq
      %v890 = vshrl.u32 %v889, 7
      %v891 = vsub.s32 1, %v890
      %v892 = vrot.slane %v883, %v891
      %v893 = vlaneseq
      %v894 = vshrl.u32 %v893, 7
      %v895 = vsub.s32 2, %v894
      %v896 = vrot.slane %v883, %v895
      %v897 = vlaneseq
      %v898 = vshrl.u32 %v897, 7
      %v899 = vsub.s32 3, %v898
      %v900 = vrot.slane %v883, %v899
      %v905 = vsub.f32 %v846, %v888
      %v906 = vsub.f32 %v849, %v892
      %v907 = vsub.f32 %v852, %v896
      %v908 = vsub.f32 %v855, %v900
      %v909 = vmul.f32 %v905, 1.442695
      %v910 = vpow.pop %v909
      %v911 = vmul.f32 %v906, 1.442695
      %v912 = vpow.pop %v911
      %v913 = vmul.f32 %v907, 1.442695
      %v914 = vpow.pop %v913
      %v915 = vmul.f32 %v908, 1.442695
      %v916 = vpow.pop %v915
      %921 = vset.pattern.permute.xlu0 0
      %922 = vperm.xlu0 %921, %v910
      %v923 = vpop.permute.xlu0 %922
      %924 = vset.pattern.permute.xlu0 0
      %925 = vperm.xlu0 %924, %v912
      %v926 = vpop.permute.xlu0 %925
      %927 = vset.pattern.permute.xlu0 0
      %928 = vperm.xlu0 %927, %v914
      %v929 = vpop.permute.xlu0 %928
      %930 = vset.pattern.permute.xlu0 0
      %931 = vperm.xlu0 %930, %v916
      %v932 = vpop.permute.xlu0 %931
      %v933 = vlaneseq
      %v934 = vshrl.u32 %v933, 7
      %v935 = vsub.s32 %v562, %v934
      %v936 = vrot.slane %v923, %v935
      %v937 = vlaneseq
      %v938 = vshrl.u32 %v937, 7
      %v939 = vsub.s32 %v562, %v938
      %v940 = vrot.slane %v926, %v939
      %v941 = vlaneseq
      %v942 = vshrl.u32 %v941, 7
      %v943 = vsub.s32 %v562, %v942
      %v944 = vrot.slane %v929, %v943
      %v945 = vlaneseq
      %v946 = vshrl.u32 %v945, 7
      %v947 = vsub.s32 %v562, %v946
      %v948 = vrot.slane %v932, %v947
      %v949 = vsel %vm627, %v940, %v936
      %v950 = vsel %vm629, %v944, %v949
      %v951 = vsel %vm631, %v948, %v950
      %v953 = vsel %vm880, %v951, 0.0
      %954 = vadd.xlane.f32.xlu0 %v953
      %v955 = vpop.xlane.xlu0 %954
      %v956 = vrcp.pop %v955
      %v958 = vlaneseq
      %v959 = vshrl.u32 %v958, 7
      %v960 = vsub.s32 0, %v959
      %v961 = vrot.slane %v956, %v960
      %v962 = vlaneseq
      %v963 = vshrl.u32 %v962, 7
      %v964 = vsub.s32 1, %v963
      %v965 = vrot.slane %v956, %v964
      %v966 = vlaneseq
      %v967 = vshrl.u32 %v966, 7
      %v968 = vsub.s32 2, %v967
      %v969 = vrot.slane %v956, %v968
      %v970 = vlaneseq
      %v971 = vshrl.u32 %v970, 7
      %v972 = vsub.s32 3, %v971
      %v973 = vrot.slane %v956, %v972
      %v978 = vmul.f32 %v910, %v961
      %v979 = vmul.f32 %v912, %v965
      %v980 = vmul.f32 %v914, %v969
      %v981 = vmul.f32 %v916, %v973
      %986 = vset.pattern.permute.xlu0 0
      %987 = vperm.xlu0 %986, %v978
      %v988 = vpop.permute.xlu0 %987
      %989 = vset.pattern.permute.xlu0 0
      %990 = vperm.xlu0 %989, %v979
      %v991 = vpop.permute.xlu0 %990
      %992 = vset.pattern.permute.xlu0 0
      %993 = vperm.xlu0 %992, %v980
      %v994 = vpop.permute.xlu0 %993
      %995 = vset.pattern.permute.xlu0 0
      %996 = vperm.xlu0 %995, %v981
      %v997 = vpop.permute.xlu0 %996
      %v998 = vlaneseq
      %v999 = vshrl.u32 %v998, 7
      %v1000 = vsub.s32 %v562, %v999
      %v1001 = vrot.slane %v988, %v1000
      %v1002 = vlaneseq
      %v1003 = vshrl.u32 %v1002, 7
      %v1004 = vsub.s32 %v562, %v1003
      %v1005 = vrot.slane %v991, %v1004
      %v1006 = vlaneseq
      %v1007 = vshrl.u32 %v1006, 7
      %v1008 = vsub.s32 %v562, %v1007
      %v1009 = vrot.slane %v994, %v1008
      %v1010 = vlaneseq
      %v1011 = vshrl.u32 %v1010, 7
      %v1012 = vsub.s32 %v562, %v1011
      %v1013 = vrot.slane %v997, %v1012
      %v1014 = vsel %vm627, %v1005, %v1001
      %v1015 = vsel %vm629, %v1009, %v1014
      %v1016 = vsel %vm631, %v1013, %v1015
      %1018 = vst.msk [vmem:[%s375] sm:$0xf] %vm880, %v1016
      %v1021 = vcombine.high %v731, %v731
      %v1022 = vcombine.high %v732, %v732
      %v1023 = vmul.f32 %v978, 0.25
      %v1024 = vmul.f32 %v979, 0.25
      %v1025 = vmul.f32 %v980, 0.25
      %v1026 = vmul.f32 %v981, 0.25
      %1028 = vset.pattern.permute.xlu0 0
      %1029 = vperm.xlu0 %1028, %v1023
      %v1030 = vpop.permute.xlu0 %1029
      %v1031 = vlaneseq
      %v1032 = vshrl.u32 %v1031, 7
      %v1033 = vsub.s32 %v562, %v1032
      %v1034 = vrot.slane %v1030, %v1033
      %v1035 = vsel %vm648, %v1034, 0
      %v1037 = vsel %vm440, %v731, 0
      %1039 = vmatprep.subr.mxu0 0.0
      %1040 = vmatpush1.msra.mxu0 0.0
      %1041 = vmatprep.subr.mxu0 0.0
      %1042 = vmatpush1.msra.mxu0 0.0
      %1043 = vmatprep.subr.mxu0 0.0
      %1044 = vmatpush1.msra.mxu0 0.0
      %1045 = vmatprep.subr.mxu0 0.0
      %1046 = vmatpush1.msra.mxu0 0.0
      %1047 = vmatprep.subr.mxu0 0.0
      %1048 = vmatpush1.msra.mxu0 0.0
      %1049 = vmatprep.subr.mxu0 0.0
      %1050 = vmatpush1.msra.mxu0 0.0
      %1051 = vmatprep.subr.mxu0 0.0
      %1052 = vmatpush1.msra.mxu0 0.0
      %1053 = vmatprep.subr.mxu0 0.0
      %1054 = vmatpush1.msra.mxu0 0.0
      %1055 = vmatprep.subr.mxu0 0.0
      %1056 = vmatpush1.msra.mxu0 0.0
      %1057 = vmatprep.subr.mxu0 0.0
      %1058 = vmatpush1.msra.mxu0 0.0
      %1059 = vmatprep.subr.mxu0 0.0
      %1060 = vmatpush1.msra.mxu0 0.0
      %1061 = vmatprep.subr.mxu0 0.0
      %1062 = vmatpush1.msra.mxu0 0.0
      %1063 = vmatprep.subr.mxu0 0.0
      %1064 = vmatpush1.msra.mxu0 0.0
      %1065 = vmatprep.subr.mxu0 0.0
      %1066 = vmatpush1.msra.mxu0 0.0
      %1067 = vmatprep.subr.mxu0 0.0
      %1068 = vmatpush1.msra.mxu0 0.0
      %1069 = vmatprep.subr.mxu0 0.0
      %1070 = vmatpush1.msra.mxu0 %v1037
      %1071 = vmatprep.subr.mxu0 0.0
      %1072 = vmatpush2.msra.mxu0 0.0
      %1073 = vmatprep.subr.mxu0 0.0
      %1074 = vmatpush2.msra.mxu0 0.0
      %1075 = vmatprep.subr.mxu0 0.0
      %1076 = vmatpush2.msra.mxu0 0.0
      %1077 = vmatprep.subr.mxu0 0.0
      %1078 = vmatpush2.msra.mxu0 0.0
      %1079 = vmatprep.subr.mxu0 0.0
      %1080 = vmatpush2.msra.mxu0 0.0
      %1081 = vmatprep.subr.mxu0 0.0
      %1082 = vmatpush2.msra.mxu0 0.0
      %1083 = vmatprep.subr.mxu0 0.0
      %1084 = vmatpush2.msra.mxu0 0.0
      %1085 = vmatprep.subr.mxu0 0.0
      %1086 = vmatpush2.msra.mxu0 0.0
      %1087 = vmatprep.subr.mxu0 0.0
      %1088 = vmatpush2.msra.mxu0 0.0
      %1089 = vmatprep.subr.mxu0 0.0
      %1090 = vmatpush2.msra.mxu0 0.0
      %1091 = vmatprep.subr.mxu0 0.0
      %1092 = vmatpush2.msra.mxu0 0.0
      %1093 = vmatprep.subr.mxu0 0.0
      %1094 = vmatpush2.msra.mxu0 0.0
      %1095 = vmatprep.subr.mxu0 0.0
      %1096 = vmatpush2.msra.mxu0 0.0
      %1097 = vmatprep.subr.mxu0 0.0
      %1098 = vmatpush2.msra.mxu0 0.0
      %1099 = vmatprep.subr.mxu0 0.0
      %1100 = vmatpush2.msra.mxu0 0.0
      %1101 = vmatprep.subr.mxu0 0.0
      %1102 = vmatpush2.msra.mxu0 0.0
      %1103 = vmatprep.mubr.f32.mxu0 0.0
      %1104 = vmatmul.mubr.f32.gmra.mxu0 %v1035
      %v1105 = vpop.f32.mrf.mxu0
      %v1106 = vadd.f32 0.0, %v1105
      %v1107 = vpop.f32.mrf.mxu0
      %1108 = vdwg.mxu0
      %1110 = vset.pattern.permute.xlu0 0
      %1111 = vperm.xlu0 %1110, %v1024
      %v1112 = vpop.permute.xlu0 %1111
      %v1113 = vlaneseq
      %v1114 = vshrl.u32 %v1113, 7
      %v1115 = vsub.s32 %v562, %v1114
      %v1116 = vrot.slane %v1112, %v1115
      %v1117 = vsel %vm648, %v1116, 0
      %v1119 = vsel %vm440, %v1021, 0
      %1121 = vmatprep.subr.mxu0 0.0
      %1122 = vmatpush1.msra.mxu0 0.0
      %1123 = vmatprep.subr.mxu0 0.0
      %1124 = vmatpush1.msra.mxu0 0.0
      %1125 = vmatprep.subr.mxu0 0.0
      %1126 = vmatpush1.msra.mxu0 0.0
      %1127 = vmatprep.subr.mxu0 0.0
      %1128 = vmatpush1.msra.mxu0 0.0
      %1129 = vmatprep.subr.mxu0 0.0
      %1130 = vmatpush1.msra.mxu0 0.0
      %1131 = vmatprep.subr.mxu0 0.0
      %1132 = vmatpush1.msra.mxu0 0.0
      %1133 = vmatprep.subr.mxu0 0.0
      %1134 = vmatpush1.msra.mxu0 0.0
      %1135 = vmatprep.subr.mxu0 0.0
      %1136 = vmatpush1.msra.mxu0 0.0
      %1137 = vmatprep.subr.mxu0 0.0
      %1138 = vmatpush1.msra.mxu0 0.0
      %1139 = vmatprep.subr.mxu0 0.0
      %1140 = vmatpush1.msra.mxu0 0.0
      %1141 = vmatprep.subr.mxu0 0.0
      %1142 = vmatpush1.msra.mxu0 0.0
      %1143 = vmatprep.subr.mxu0 0.0
      %1144 = vmatpush1.msra.mxu0 0.0
      %1145 = vmatprep.subr.mxu0 0.0
      %1146 = vmatpush1.msra.mxu0 0.0
      %1147 = vmatprep.subr.mxu0 0.0
      %1148 = vmatpush1.msra.mxu0 0.0
      %1149 = vmatprep.subr.mxu0 0.0
      %1150 = vmatpush1.msra.mxu0 0.0
      %1151 = vmatprep.subr.mxu0 0.0
      %1152 = vmatpush1.msra.mxu0 %v1119
      %1153 = vmatprep.subr.mxu0 0.0
      %1154 = vmatpush2.msra.mxu0 0.0
      %1155 = vmatprep.subr.mxu0 0.0
      %1156 = vmatpush2.msra.mxu0 0.0
      %1157 = vmatprep.subr.mxu0 0.0
      %1158 = vmatpush2.msra.mxu0 0.0
      %1159 = vmatprep.subr.mxu0 0.0
      %1160 = vmatpush2.msra.mxu0 0.0
      %1161 = vmatprep.subr.mxu0 0.0
      %1162 = vmatpush2.msra.mxu0 0.0
      %1163 = vmatprep.subr.mxu0 0.0
      %1164 = vmatpush2.msra.mxu0 0.0
      %1165 = vmatprep.subr.mxu0 0.0
      %1166 = vmatpush2.msra.mxu0 0.0
      %1167 = vmatprep.subr.mxu0 0.0
      %1168 = vmatpush2.msra.mxu0 0.0
      %1169 = vmatprep.subr.mxu0 0.0
      %1170 = vmatpush2.msra.mxu0 0.0
      %1171 = vmatprep.subr.mxu0 0.0
      %1172 = vmatpush2.msra.mxu0 0.0
      %1173 = vmatprep.subr.mxu0 0.0
      %1174 = vmatpush2.msra.mxu0 0.0
      %1175 = vmatprep.subr.mxu0 0.0
      %1176 = vmatpush2.msra.mxu0 0.0
      %1177 = vmatprep.subr.mxu0 0.0
      %1178 = vmatpush2.msra.mxu0 0.0
      %1179 = vmatprep.subr.mxu0 0.0
      %1180 = vmatpush2.msra.mxu0 0.0
      %1181 = vmatprep.subr.mxu0 0.0
      %1182 = vmatpush2.msra.mxu0 0.0
      %1183 = vmatprep.subr.mxu0 0.0
      %1184 = vmatpush2.msra.mxu0 0.0
      %1185 = vmatprep.mubr.f32.mxu0 0.0
      %1186 = vmatmul.mubr.f32.gmra.mxu0 %v1117
      %v1187 = vpop.f32.mrf.mxu0
      %v1188 = vadd.f32 0.0, %v1187
      %v1189 = vpop.f32.mrf.mxu0
      %1190 = vdwg.mxu0
      %1192 = vset.pattern.permute.xlu0 0
      %1193 = vperm.xlu0 %1192, %v1025
      %v1194 = vpop.permute.xlu0 %1193
      %v1195 = vlaneseq
      %v1196 = vshrl.u32 %v1195, 7
      %v1197 = vsub.s32 %v562, %v1196
      %v1198 = vrot.slane %v1194, %v1197
      %v1199 = vsel %vm648, %v1198, 0
      %v1201 = vsel %vm440, %v732, 0
      %1203 = vmatprep.subr.mxu0 0.0
      %1204 = vmatpush1.msra.mxu0 0.0
      %1205 = vmatprep.subr.mxu0 0.0
      %1206 = vmatpush1.msra.mxu0 0.0
      %1207 = vmatprep.subr.mxu0 0.0
      %1208 = vmatpush1.msra.mxu0 0.0
      %1209 = vmatprep.subr.mxu0 0.0
      %1210 = vmatpush1.msra.mxu0 0.0
      %1211 = vmatprep.subr.mxu0 0.0
      %1212 = vmatpush1.msra.mxu0 0.0
      %1213 = vmatprep.subr.mxu0 0.0
      %1214 = vmatpush1.msra.mxu0 0.0
      %1215 = vmatprep.subr.mxu0 0.0
      %1216 = vmatpush1.msra.mxu0 0.0
      %1217 = vmatprep.subr.mxu0 0.0
      %1218 = vmatpush1.msra.mxu0 0.0
      %1219 = vmatprep.subr.mxu0 0.0
      %1220 = vmatpush1.msra.mxu0 0.0
      %1221 = vmatprep.subr.mxu0 0.0
      %1222 = vmatpush1.msra.mxu0 0.0
      %1223 = vmatprep.subr.mxu0 0.0
      %1224 = vmatpush1.msra.mxu0 0.0
      %1225 = vmatprep.subr.mxu0 0.0
      %1226 = vmatpush1.msra.mxu0 0.0
      %1227 = vmatprep.subr.mxu0 0.0
      %1228 = vmatpush1.msra.mxu0 0.0
      %1229 = vmatprep.subr.mxu0 0.0
      %1230 = vmatpush1.msra.mxu0 0.0
      %1231 = vmatprep.subr.mxu0 0.0
      %1232 = vmatpush1.msra.mxu0 0.0
      %1233 = vmatprep.subr.mxu0 0.0
      %1234 = vmatpush1.msra.mxu0 %v1201
      %1235 = vmatprep.subr.mxu0 0.0
      %1236 = vmatpush2.msra.mxu0 0.0
      %1237 = vmatprep.subr.mxu0 0.0
      %1238 = vmatpush2.msra.mxu0 0.0
      %1239 = vmatprep.subr.mxu0 0.0
      %1240 = vmatpush2.msra.mxu0 0.0
      %1241 = vmatprep.subr.mxu0 0.0
      %1242 = vmatpush2.msra.mxu0 0.0
      %1243 = vmatprep.subr.mxu0 0.0
      %1244 = vmatpush2.msra.mxu0 0.0
      %1245 = vmatprep.subr.mxu0 0.0
      %1246 = vmatpush2.msra.mxu0 0.0
      %1247 = vmatprep.subr.mxu0 0.0
      %1248 = vmatpush2.msra.mxu0 0.0
      %1249 = vmatprep.subr.mxu0 0.0
      %1250 = vmatpush2.msra.mxu0 0.0
      %1251 = vmatprep.subr.mxu0 0.0
      %1252 = vmatpush2.msra.mxu0 0.0
      %1253 = vmatprep.subr.mxu0 0.0
      %1254 = vmatpush2.msra.mxu0 0.0
      %1255 = vmatprep.subr.mxu0 0.0
      %1256 = vmatpush2.msra.mxu0 0.0
      %1257 = vmatprep.subr.mxu0 0.0
      %1258 = vmatpush2.msra.mxu0 0.0
      %1259 = vmatprep.subr.mxu0 0.0
      %1260 = vmatpush2.msra.mxu0 0.0
      %1261 = vmatprep.subr.mxu0 0.0
      %1262 = vmatpush2.msra.mxu0 0.0
      %1263 = vmatprep.subr.mxu0 0.0
      %1264 = vmatpush2.msra.mxu0 0.0
      %1265 = vmatprep.subr.mxu0 0.0
      %1266 = vmatpush2.msra.mxu0 0.0
      %1267 = vmatprep.mubr.f32.mxu0 0.0
      %1268 = vmatmul.mubr.f32.gmra.mxu0 %v1199
      %v1269 = vpop.f32.mrf.mxu0
      %v1270 = vadd.f32 0.0, %v1269
      %v1271 = vpop.f32.mrf.mxu0
      %1272 = vdwg.mxu0
      %1274 = vset.pattern.permute.xlu0 0
      %1275 = vperm.xlu0 %1274, %v1026
      %v1276 = vpop.permute.xlu0 %1275
      %v1277 = vlaneseq
      %v1278 = vshrl.u32 %v1277, 7
      %v1279 = vsub.s32 %v562, %v1278
      %v1280 = vrot.slane %v1276, %v1279
      %v1281 = vsel %vm648, %v1280, 0
      %v1283 = vsel %vm440, %v1022, 0
      %1285 = vmatprep.subr.mxu0 0.0
      %1286 = vmatpush1.msra.mxu0 0.0
      %1287 = vmatprep.subr.mxu0 0.0
      %1288 = vmatpush1.msra.mxu0 0.0
      %1289 = vmatprep.subr.mxu0 0.0
      %1290 = vmatpush1.msra.mxu0 0.0
      %1291 = vmatprep.subr.mxu0 0.0
      %1292 = vmatpush1.msra.mxu0 0.0
      %1293 = vmatprep.subr.mxu0 0.0
      %1294 = vmatpush1.msra.mxu0 0.0
      %1295 = vmatprep.subr.mxu0 0.0
      %1296 = vmatpush1.msra.mxu0 0.0
      %1297 = vmatprep.subr.mxu0 0.0
      %1298 = vmatpush1.msra.mxu0 0.0
      %1299 = vmatprep.subr.mxu0 0.0
      %1300 = vmatpush1.msra.mxu0 0.0
      %1301 = vmatprep.subr.mxu0 0.0
      %1302 = vmatpush1.msra.mxu0 0.0
      %1303 = vmatprep.subr.mxu0 0.0
      %1304 = vmatpush1.msra.mxu0 0.0
      %1305 = vmatprep.subr.mxu0 0.0
      %1306 = vmatpush1.msra.mxu0 0.0
      %1307 = vmatprep.subr.mxu0 0.0
      %1308 = vmatpush1.msra.mxu0 0.0
      %1309 = vmatprep.subr.mxu0 0.0
      %1310 = vmatpush1.msra.mxu0 0.0
      %1311 = vmatprep.subr.mxu0 0.0
      %1312 = vmatpush1.msra.mxu0 0.0
      %1313 = vmatprep.subr.mxu0 0.0
      %1314 = vmatpush1.msra.mxu0 0.0
      %1315 = vmatprep.subr.mxu0 0.0
      %1316 = vmatpush1.msra.mxu0 %v1283
      %1317 = vmatprep.subr.mxu0 0.0
      %1318 = vmatpush2.msra.mxu0 0.0
      %1319 = vmatprep.subr.mxu0 0.0
      %1320 = vmatpush2.msra.mxu0 0.0
      %1321 = vmatprep.subr.mxu0 0.0
      %1322 = vmatpush2.msra.mxu0 0.0
      %1323 = vmatprep.subr.mxu0 0.0
      %1324 = vmatpush2.msra.mxu0 0.0
      %1325 = vmatprep.subr.mxu0 0.0
      %1326 = vmatpush2.msra.mxu0 0.0
      %1327 = vmatprep.subr.mxu0 0.0
      %1328 = vmatpush2.msra.mxu0 0.0
      %1329 = vmatprep.subr.mxu0 0.0
      %1330 = vmatpush2.msra.mxu0 0.0
      %1331 = vmatprep.subr.mxu0 0.0
      %1332 = vmatpush2.msra.mxu0 0.0
      %1333 = vmatprep.subr.mxu0 0.0
      %1334 = vmatpush2.msra.mxu0 0.0
      %1335 = vmatprep.subr.mxu0 0.0
      %1336 = vmatpush2.msra.mxu0 0.0
      %1337 = vmatprep.subr.mxu0 0.0
      %1338 = vmatpush2.msra.mxu0 0.0
      %1339 = vmatprep.subr.mxu0 0.0
      %1340 = vmatpush2.msra.mxu0 0.0
      %1341 = vmatprep.subr.mxu0 0.0
      %1342 = vmatpush2.msra.mxu0 0.0
      %1343 = vmatprep.subr.mxu0 0.0
      %1344 = vmatpush2.msra.mxu0 0.0
      %1345 = vmatprep.subr.mxu0 0.0
      %1346 = vmatpush2.msra.mxu0 0.0
      %1347 = vmatprep.subr.mxu0 0.0
      %1348 = vmatpush2.msra.mxu0 0.0
      %1349 = vmatprep.mubr.f32.mxu0 0.0
      %1350 = vmatmul.mubr.f32.gmra.mxu0 %v1281
      %v1351 = vpop.f32.mrf.mxu0
      %v1352 = vadd.f32 0.0, %v1351
      %v1353 = vpop.f32.mrf.mxu0
      %1354 = vdwg.mxu0
      %v1355 = vld [vmem:[%s5] sm:$0xff]
      %v1356 = vld [vmem:[%s5 + $0x8] sm:$0xff]
      %v1357 = vld [vmem:[%s5 + $0x10] sm:$0xff]
      %v1358 = vld [vmem:[%s5 + $0x18] sm:$0xff]
      %v1359 = vld [vmem:[%s5 + $0x20] sm:$0xff]
      %v1360 = vld [vmem:[%s5 + $0x28] sm:$0xff]
      %v1361 = vld [vmem:[%s5 + $0x30] sm:$0xff]
      %v1362 = vld [vmem:[%s5 + $0x38] sm:$0xff]
      %v1363 = vld [vmem:[%s5 + $0x40] sm:$0xff]
      %v1364 = vld [vmem:[%s5 + $0x48] sm:$0xff]
      %v1365 = vld [vmem:[%s5 + $0x50] sm:$0xff]
      %v1366 = vld [vmem:[%s5 + $0x58] sm:$0xff]
      %v1367 = vld [vmem:[%s5 + $0x60] sm:$0xff]
      %v1368 = vld [vmem:[%s5 + $0x68] sm:$0xff]
      %v1369 = vld [vmem:[%s5 + $0x70] sm:$0xff]
      %v1370 = vld [vmem:[%s5 + $0x78] sm:$0xff]
      %v1371 = vld [vmem:[%s6] sm:$0x1]
      %v1373 = vlaneseq
      %v1374 = vshrl.u32 %v1373, 7
      %v1375 = vsub.s32 0, %v1374
      %v1376 = vrot.slane %v1371, %v1375
      %v1382 = vrot.slane %v1188, 7
      %v1383 = vsel %vm627, %v1382, %v1106
      %v1384 = vrot.slane %v1270, 6
      %v1385 = vsel %vm629, %v1384, %v1383
      %v1386 = vrot.slane %v1352, 5
      %v1387 = vsel %vm631, %v1386, %v1385
      %1389 = vmatprep.subr.mxu0 0.0
      %1390 = vmatpush1.msra.mxu0 %v1370
      %1391 = vmatprep.subr.mxu0 0.0
      %1392 = vmatpush1.msra.mxu0 %v1369
      %1393 = vmatprep.subr.mxu0 0.0
      %1394 = vmatpush1.msra.mxu0 %v1368
      %1395 = vmatprep.subr.mxu0 0.0
      %1396 = vmatpush1.msra.mxu0 %v1367
      %1397 = vmatprep.subr.mxu0 0.0
      %1398 = vmatpush1.msra.mxu0 %v1366
      %1399 = vmatprep.subr.mxu0 0.0
      %1400 = vmatpush1.msra.mxu0 %v1365
      %1401 = vmatprep.subr.mxu0 0.0
      %1402 = vmatpush1.msra.mxu0 %v1364
      %1403 = vmatprep.subr.mxu0 0.0
      %1404 = vmatpush1.msra.mxu0 %v1363
      %1405 = vmatprep.subr.mxu0 0.0
      %1406 = vmatpush1.msra.mxu0 %v1362
      %1407 = vmatprep.subr.mxu0 0.0
      %1408 = vmatpush1.msra.mxu0 %v1361
      %1409 = vmatprep.subr.mxu0 0.0
      %1410 = vmatpush1.msra.mxu0 %v1360
      %1411 = vmatprep.subr.mxu0 0.0
      %1412 = vmatpush1.msra.mxu0 %v1359
      %1413 = vmatprep.subr.mxu0 0.0
      %1414 = vmatpush1.msra.mxu0 %v1358
      %1415 = vmatprep.subr.mxu0 0.0
      %1416 = vmatpush1.msra.mxu0 %v1357
      %1417 = vmatprep.subr.mxu0 0.0
      %1418 = vmatpush1.msra.mxu0 %v1356
      %1419 = vmatprep.subr.mxu0 0.0
      %1420 = vmatpush1.msra.mxu0 %v1355
      %1421 = vmatprep.subr.mxu0 0.0
      %1422 = vmatpush2.msra.mxu0 0.0
      %1423 = vmatprep.subr.mxu0 0.0
      %1424 = vmatpush2.msra.mxu0 0.0
      %1425 = vmatprep.subr.mxu0 0.0
      %1426 = vmatpush2.msra.mxu0 0.0
      %1427 = vmatprep.subr.mxu0 0.0
      %1428 = vmatpush2.msra.mxu0 0.0
      %1429 = vmatprep.subr.mxu0 0.0
      %1430 = vmatpush2.msra.mxu0 0.0
      %1431 = vmatprep.subr.mxu0 0.0
      %1432 = vmatpush2.msra.mxu0 0.0
      %1433 = vmatprep.subr.mxu0 0.0
      %1434 = vmatpush2.msra.mxu0 0.0
      %1435 = vmatprep.subr.mxu0 0.0
      %1436 = vmatpush2.msra.mxu0 0.0
      %1437 = vmatprep.subr.mxu0 0.0
      %1438 = vmatpush2.msra.mxu0 0.0
      %1439 = vmatprep.subr.mxu0 0.0
      %1440 = vmatpush2.msra.mxu0 0.0
      %1441 = vmatprep.subr.mxu0 0.0
      %1442 = vmatpush2.msra.mxu0 0.0
      %1443 = vmatprep.subr.mxu0 0.0
      %1444 = vmatpush2.msra.mxu0 0.0
      %1445 = vmatprep.subr.mxu0 0.0
      %1446 = vmatpush2.msra.mxu0 0.0
      %1447 = vmatprep.subr.mxu0 0.0
      %1448 = vmatpush2.msra.mxu0 0.0
      %1449 = vmatprep.subr.mxu0 0.0
      %1450 = vmatpush2.msra.mxu0 0.0
      %1451 = vmatprep.subr.mxu0 0.0
      %1452 = vmatpush2.msra.mxu0 0.0
      %1453 = vmatprep.mubr.f32.mxu0 0.0
      %1454 = vmatmul.mubr.f32.gmra.mxu0 %v1387
      %v1455 = vpop.f32.mrf.mxu0
      %v1456 = vadd.f32 %v1376, %v1455
      %v1457 = vpop.f32.mrf.mxu0
      %1458 = vdwg.mxu0
      %v1459 = vtanh.pop %v1456
      %v1460 = vld [vmem:[%s7] sm:$0xff]
      %v1461 = vld [vmem:[%s7 + $0x8] sm:$0xff]
      %v1462 = vld [vmem:[%s7 + $0x10] sm:$0xff]
      %v1463 = vld [vmem:[%s7 + $0x18] sm:$0xff]
      %v1464 = vld [vmem:[%s7 + $0x20] sm:$0xff]
      %v1465 = vld [vmem:[%s7 + $0x28] sm:$0xff]
      %v1466 = vld [vmem:[%s7 + $0x30] sm:$0xff]
      %v1467 = vld [vmem:[%s7 + $0x38] sm:$0xff]
      %v1468 = vld [vmem:[#allocation2] sm:$0x1]
      %v1470 = vlaneseq
      %v1471 = vshrl.u32 %v1470, 7
      %v1472 = vsub.s32 0, %v1471
      %v1473 = vrot.slane %v1468, %v1472
      %vm1475 = vcmask 523264
      %v1477 = vsel %vm1475, %v1459, 0
      %1479 = vmatprep.subr.mxu0 0.0
      %1480 = vmatpush1.msra.mxu0 0.0
      %1481 = vmatprep.subr.mxu0 0.0
      %1482 = vmatpush1.msra.mxu0 0.0
      %1483 = vmatprep.subr.mxu0 0.0
      %1484 = vmatpush1.msra.mxu0 0.0
      %1485 = vmatprep.subr.mxu0 0.0
      %1486 = vmatpush1.msra.mxu0 0.0
      %1487 = vmatprep.subr.mxu0 0.0
      %1488 = vmatpush1.msra.mxu0 0.0
      %1489 = vmatprep.subr.mxu0 0.0
      %1490 = vmatpush1.msra.mxu0 0.0
      %1491 = vmatprep.subr.mxu0 0.0
      %1492 = vmatpush1.msra.mxu0 0.0
      %1493 = vmatprep.subr.mxu0 0.0
      %1494 = vmatpush1.msra.mxu0 0.0
      %1495 = vmatprep.subr.mxu0 0.0
      %1496 = vmatpush1.msra.mxu0 %v1467
      %1497 = vmatprep.subr.mxu0 0.0
      %1498 = vmatpush1.msra.mxu0 %v1466
      %1499 = vmatprep.subr.mxu0 0.0
      %1500 = vmatpush1.msra.mxu0 %v1465
      %1501 = vmatprep.subr.mxu0 0.0
      %1502 = vmatpush1.msra.mxu0 %v1464
      %1503 = vmatprep.subr.mxu0 0.0
      %1504 = vmatpush1.msra.mxu0 %v1463
      %1505 = vmatprep.subr.mxu0 0.0
      %1506 = vmatpush1.msra.mxu0 %v1462
      %1507 = vmatprep.subr.mxu0 0.0
      %1508 = vmatpush1.msra.mxu0 %v1461
      %1509 = vmatprep.subr.mxu0 0.0
      %1510 = vmatpush1.msra.mxu0 %v1460
      %1511 = vmatprep.subr.mxu0 0.0
      %1512 = vmatpush2.msra.mxu0 0.0
      %1513 = vmatprep.subr.mxu0 0.0
      %1514 = vmatpush2.msra.mxu0 0.0
      %1515 = vmatprep.subr.mxu0 0.0
      %1516 = vmatpush2.msra.mxu0 0.0
      %1517 = vmatprep.subr.mxu0 0.0
      %1518 = vmatpush2.msra.mxu0 0.0
      %1519 = vmatprep.subr.mxu0 0.0
      %1520 = vmatpush2.msra.mxu0 0.0
      %1521 = vmatprep.subr.mxu0 0.0
      %1522 = vmatpush2.msra.mxu0 0.0
      %1523 = vmatprep.subr.mxu0 0.0
      %1524 = vmatpush2.msra.mxu0 0.0
      %1525 = vmatprep.subr.mxu0 0.0
      %1526 = vmatpush2.msra.mxu0 0.0
      %1527 = vmatprep.subr.mxu0 0.0
      %1528 = vmatpush2.msra.mxu0 0.0
      %1529 = vmatprep.subr.mxu0 0.0
      %1530 = vmatpush2.msra.mxu0 0.0
      %1531 = vmatprep.subr.mxu0 0.0
      %1532 = vmatpush2.msra.mxu0 0.0
      %1533 = vmatprep.subr.mxu0 0.0
      %1534 = vmatpush2.msra.mxu0 0.0
      %1535 = vmatprep.subr.mxu0 0.0
      %1536 = vmatpush2.msra.mxu0 0.0
      %1537 = vmatprep.subr.mxu0 0.0
      %1538 = vmatpush2.msra.mxu0 0.0
      %1539 = vmatprep.subr.mxu0 0.0
      %1540 = vmatpush2.msra.mxu0 0.0
      %1541 = vmatprep.subr.mxu0 0.0
      %1542 = vmatpush2.msra.mxu0 0.0
      %1543 = vmatprep.mubr.f32.mxu0 0.0
      %1544 = vmatmul.mubr.f32.gmra.mxu0 %v1477
      %v1545 = vpop.f32.mrf.mxu0
      %v1546 = vadd.f32 %v1473, %v1545
      %v1547 = vpop.f32.mrf.mxu0
      %1548 = vdwg.mxu0
      %vm1549 = vcmask 3072
      %1550 = vst.msk [vmem:[%s371] sm:$0xf] %vm1549, %v1546
      %p1551 = scmp.lt.s32.totalorder %s24, 1
      %s1552 = scalar_select %p1551, %s24, 1
      %s1553 = smul.addr %s1552, 4
      %s1554 = scalar_lea.vmem %s9, %s1553
      %p1555 = scmp.lt.s32.totalorder %s24, 1
      %s1556 = scalar_select %p1555, %s24, 1
      %s1557 = smul.addr %s1556, 4
      %s1558 = scalar_lea.vmem %s10, %s1557
      // Predicated region
      $region57: #{aggregation_project_forward.1} parent=55 // pred_check
        %p1559 = pneg %p236
      $region58: #{aggregation_project_forward.1} parent=55 // pred_check_branch
        %1561 = sbr.rel (%p1559) target = $region60
      $region59: #{aggregation_project_forward.1} parent=55 // pred_region
        _
      $region60: #{aggregation_project_forward.1} parent=55 // pred_fallthru
        _
      // Predicated region
      $region61: #{aggregation_project_forward.1} parent=55 // pred_check
        %p1562 = pneg %p262
      $region62: #{aggregation_project_forward.1} parent=55 // pred_check_branch
        %1564 = sbr.rel (%p1562) target = $region64
      $region63: #{aggregation_project_forward.1} parent=55 // pred_region
        _
      $region64: #{aggregation_project_forward.1} parent=55 // pred_fallthru
        _
    $region56: #{aggregation_project_forward.1} parent=5 // pred_fallthru
      _
    %p1565 = scmp.le.s32.totalorder 2, %s19
    // Predicated region
    $region65: #{aggregation_project_forward.1} parent=5 // pred_check
      %p1566 = pneg %p1565
    $region66: #{aggregation_project_forward.1} parent=5 // pred_check_branch
      %1568 = sbr.rel (%p1566) target = $region68
    $region67: #{aggregation_project_forward.1} parent=5 // pred_region
      %s1569 = ssub.s32 %s19, 2
      // Predicated region
      $region69: #{aggregation_project_forward.1} parent=67 // pred_check
        %p1570 = pneg %p242
      $region70: #{aggregation_project_forward.1} parent=67 // pred_check_branch
        %1572 = sbr.rel (%p1570) target = $region72
      $region71: #{aggregation_project_forward.1} parent=67 // pred_region
        %p1573 = scmp.lt.s32.totalorder %s25, 1
        %s1574 = scalar_select %p1573, %s25, 1
        %s1575 = smul.addr %s1574, 4
        %s1576 = scalar_lea.vmem %s9, %s1575
      $region72: #{aggregation_project_forward.1} parent=67 // pred_fallthru
        _
      // Predicated region
      $region73: #{aggregation_project_forward.1} parent=67 // pred_check
        %p1577 = pneg %p268
      $region74: #{aggregation_project_forward.1} parent=67 // pred_check_branch
        %1579 = sbr.rel (%p1577) target = $region76
      $region75: #{aggregation_project_forward.1} parent=67 // pred_region
        %p1580 = scmp.lt.s32.totalorder %s25, 1
        %s1581 = scalar_select %p1580, %s25, 1
        %s1582 = smul.addr %s1581, 4
        %s1583 = scalar_lea.vmem %s10, %s1582
      $region76: #{aggregation_project_forward.1} parent=67 // pred_fallthru
        _
    $region68: #{aggregation_project_forward.1} parent=5 // pred_fallthru
      _
  $region6: #{aggregation_project_forward.1} parent=0 // loop_footer
    %s23 = sadd.s32 1, %s19
  $region7: #{aggregation_project_forward.1} parent=0 // loop_footer_branch
    %18 = sbr.rel target = $region3
  $region8: #{aggregation_project_forward.1} parent=0 // loop_exit
    _

</llo_original>
